<compile_context>
chip_gen: v7x
topology: tpu7x:2x2x1
jax: 0.10.0
libtpu: 0.0.40
codegen_flags: <defaults>
</compile_context>

<pallas_src>
import functools

import jax
import jax.numpy as jnp
from jax.experimental import pallas as pl
from jax.experimental.pallas import tpu as pltpu


# ----------------------------- configuration --------------------------------
HIDDEN_CHANNELS = 64
TILE_ROWS = 4096                   # rows per grid step (sublane multiple); sweepable


def _silu(x):
    # FAENet default act = swish / SiLU
    return x * jax.nn.sigmoid(x)


def _round_up(x, m):
    return ((x + m - 1) // m) * m


# ------------------------------- kernel --------------------------------------
def output_block_kernel(h_ref, batch_ref, w1_ref, b1_ref, w2_ref, b2_ref,
                        wa_ref, ba_ref, out_ref, *, n_rows):
    """One row-tile: per-node energy + fused per-graph partial sums."""
    tile = h_ref.shape[0]
    b_pad = out_ref.shape[1]

    h = h_ref[...]                                               # (tile, H) f32

    # lin1 + activation (main MXU matmul, NN form).
    h1 = _silu(jnp.dot(h, w1_ref[...],
                       preferred_element_type=jnp.float32) + b1_ref[...])

    # lin2 / w_lin as lane-major rows via NT matmuls: (1,K) x (tile,K) -> (1,tile).
    nt = (((1,), (1,)), ((), ()))
    e = jax.lax.dot_general(w2_ref[...], h1, nt,
                            preferred_element_type=jnp.float32) + b2_ref[...]
    alpha = jax.lax.dot_general(wa_ref[...], h, nt,
                                preferred_element_type=jnp.float32) + ba_ref[...]
    e = e * alpha                                                # (1, tile)

    # Mask the undefined tail rows of the ragged last block to exactly 0
    # (jnp.where, not multiply, so stale NaN/Inf cannot leak into the sums).
    col = (jax.lax.broadcasted_iota(jnp.int32, (1, tile), 1)
           + pl.program_id(0) * tile)
    e = jnp.where(col < n_rows, e, 0.0)

    # Fused segment-sum partial: one-hot graph mask along sublanes, lane reduce.
    gid = jax.lax.broadcasted_iota(jnp.int32, (b_pad, tile), 0)  # graph id / sublane
    onehot = batch_ref[0] == gid                                 # (b_pad, tile) bool
    partial = jnp.sum(jnp.where(onehot, e, 0.0), axis=1, keepdims=True)
    out_ref[0] = partial                                         # (b_pad, 1)


# ------------------------------- wrapper --------------------------------------
@functools.partial(jax.jit, static_argnames=("num_graphs",))
def output_block_forward(params, h, batch, num_graphs,
                         edge_index=None, edge_weight=None, alpha=None):
    """OutputBlock.forward for energy_head='weighted-av-final-embeds' (eval mode).

    edge_index / edge_weight / alpha are accepted for signature fidelity but
    unused (alpha is recomputed from h for this energy head, exactly as in the
    PyTorch module).
    """
    # TODO(synk): F.dropout(p=dropout_lin) is the identity in eval mode; a
    # training-mode kernel would draw a mask with pltpu.prng_* inside the kernel.
    n, hidden = h.shape
    h2 = params["w1_t"].shape[1]

    # Large tiles to amortize per-step overhead, but keep >= 2 blocks so both
    # v7x TensorCores get work under dimension_semantics=("parallel",).
    tile = max(8, min(TILE_ROWS, _round_up(-(-n // 2), 8)))
    num_tiles = -(-n // tile)
    b_pad = max(8, _round_up(num_graphs, 8))

    # Lane-dense batch-id blocks. Only the tiny int32 id vector is padded
    # (N x 4 B); h itself is streamed unpadded with a ragged last block.
    batch_i32 = batch.astype(jnp.int32)
    pad = num_tiles * tile - n
    batch3d = jnp.pad(batch_i32, (0, pad)).reshape(num_tiles, 1, tile)

    kernel = functools.partial(output_block_kernel, n_rows=n)
    partials = pl.pallas_call(
        kernel,
        out_shape=jax.ShapeDtypeStruct((num_tiles, b_pad, 1), jnp.float32),
        grid=(num_tiles,),
        in_specs=[
            pl.BlockSpec((tile, hidden), lambda i: (i, 0)),     # h rows (streamed)
            pl.BlockSpec((1, 1, tile), lambda i: (i, 0, 0)),    # batch ids (lane-dense)
            pl.BlockSpec((hidden, h2), lambda i: (0, 0)),       # lin1 weight (resident)
            pl.BlockSpec((1, h2), lambda i: (0, 0)),            # lin1 bias
            pl.BlockSpec((1, h2), lambda i: (0, 0)),            # lin2 weight row
            pl.BlockSpec((1, 1), lambda i: (0, 0)),             # lin2 bias
            pl.BlockSpec((1, hidden), lambda i: (0, 0)),        # w_lin weight row
            pl.BlockSpec((1, 1), lambda i: (0, 0)),             # w_lin bias
        ],
        out_specs=pl.BlockSpec((1, b_pad, 1), lambda i: (i, 0, 0)),
        compiler_params=pltpu.CompilerParams(
            dimension_semantics=("parallel",)),
    )(h, batch3d, params["w1_t"], params["b1"], params["w2_row"],
      params["b2"], params["wa_row"], params["ba"])

    # Tiny (num_tiles, B_pad, 1) reduction finishes the scatter-add.
    return jnp.sum(partials, axis=0)[:num_graphs]               # (num_graphs, 1)


# --------------------------- parameter construction ---------------------------
def xavier_uniform(key, fan_in, fan_out):
    a = (6.0 / (fan_in + fan_out)) ** 0.5
    # PyTorch weight is [out, in]; we directly build the transposed [in, out].
    return jax.random.uniform(key, (fan_in, fan_out), jnp.float32, -a, a)


def make_params(key, hidden=HIDDEN_CHANNELS):
    k1, k2, k3 = jax.random.split(key, 3)
    h2 = hidden // 2
    w1_t = xavier_uniform(k1, hidden, h2)          # lin1, [in, out]
    b1 = jnp.zeros((1, h2), jnp.float32)
    w2_t = xavier_uniform(k2, h2, 1)               # lin2, [in, out]
    b2 = jnp.zeros((1, 1), jnp.float32)
    wa_t = xavier_uniform(k3, hidden, 1)           # w_lin, [in, out]
    ba = jnp.zeros((1, 1), jnp.float32)
    return {
        # reference (transposed) forms
        "w1_t": w1_t, "b1": b1, "w2_t": w2_t, "b2": b2, "wa_t": wa_t, "ba": ba,
        # row forms fed to the kernel (PyTorch [out, in] layout, out = 1)
        "w2_row": w2_t.T,          # (1, h2)
        "wa_row": wa_t.T,          # (1, hidden)
    }


# ------------------------------ JAX reference ----------------------------------
def reference_forward(params, h, batch, num_graphs):
    alpha = h @ params["wa_t"] + params["ba"]
    x = _silu(h @ params["w1_t"] + params["b1"])
    x = x @ params["w2_t"] + params["b2"]
    e = x * alpha
    return jax.ops.segment_sum(e, batch, num_segments=num_graphs)


# ---------------------------------- main ---------------------------------------
if __name__ == "__main__":
    key = jax.random.PRNGKey(0)
    k_par, k_h = jax.random.split(key, 2)

    params = make_params(k_par)

    # N=1000 nodes, 4 graphs: tile = 504 -> 2 grid steps + an 8-row masked tail.
    N, B = 1000, 4
    h = jax.random.normal(k_h, (N, HIDDEN_CHANNELS), jnp.float32)
    batch = jnp.minimum(jnp.arange(N, dtype=jnp.int32) // ((N + B - 1) // B),
                        B - 1)
    edge_index = jnp.zeros((2, 1), jnp.int32)      # unused by the forward
    edge_weight = jnp.zeros((1,), jnp.float32)     # unused by the forward

    out = output_block_forward(params, h, batch, B,
                               edge_index=edge_index, edge_weight=edge_weight)
    out = jax.block_until_ready(out)

    # correctness check vs plain-JAX reference
    out_ref = reference_forward(params, h, batch, B)

    assert out.shape == (B, 1)
    assert jnp.allclose(out, out_ref, atol=1e-3, rtol=1e-3), (
        float(jnp.max(jnp.abs(out - out_ref))))

    print("KERNEL_OK")
</pallas_src>

<mosaic_0001>
module attributes {stable_mosaic.version = 11 : i64} {
  func.func @output_block_kernel(%arg0: i32, %arg1: memref<504x64xf32, #tpu.memory_space<vmem>>, %arg2: memref<1x1x504xi32, #tpu.memory_space<vmem>>, %arg3: memref<64x32xf32, #tpu.memory_space<vmem>>, %arg4: memref<1x32xf32, #tpu.memory_space<vmem>>, %arg5: memref<1x32xf32, #tpu.memory_space<vmem>>, %arg6: memref<1x1xf32, #tpu.memory_space<vmem>>, %arg7: memref<1x64xf32, #tpu.memory_space<vmem>>, %arg8: memref<1x1xf32, #tpu.memory_space<vmem>>, %arg9: memref<1x8x1xf32, #tpu.memory_space<vmem>>) attributes {dimension_semantics = [#tpu.dimension_semantics<parallel>], iteration_bounds = array<i64: 2>, scalar_prefetch = 0 : i64, scratch_operands = 0 : i64, tpu.core_type = #tpu.core_type<tc>, window_params = [{transform_indices = @transform_0, window_bounds = array<i64: 504, 64>}, {transform_indices = @transform_1, window_bounds = array<i64: 1, 1, 504>}, {pipeline_mode = #tpu.pipeline_mode<synchronous>, transform_indices = @transform_2, window_bounds = array<i64: 64, 32>}, {pipeline_mode = #tpu.pipeline_mode<synchronous>, transform_indices = @transform_3, window_bounds = array<i64: 1, 32>}, {pipeline_mode = #tpu.pipeline_mode<synchronous>, transform_indices = @transform_4, window_bounds = array<i64: 1, 32>}, {pipeline_mode = #tpu.pipeline_mode<synchronous>, transform_indices = @transform_5, window_bounds = array<i64: 1, 1>}, {pipeline_mode = #tpu.pipeline_mode<synchronous>, transform_indices = @transform_6, window_bounds = array<i64: 1, 64>}, {pipeline_mode = #tpu.pipeline_mode<synchronous>, transform_indices = @transform_7, window_bounds = array<i64: 1, 1>}, {transform_indices = @transform_8, window_bounds = array<i64: 1, 8, 1>}]} {
    %c0 = arith.constant 0 : index
    %c0_0 = arith.constant 0 : index
    %0 = vector.load %arg1[%c0, %c0_0] : memref<504x64xf32, #tpu.memory_space<vmem>>, vector<504x64xf32>
    %c0_1 = arith.constant 0 : index
    %c0_2 = arith.constant 0 : index
    %1 = vector.load %arg3[%c0_1, %c0_2] : memref<64x32xf32, #tpu.memory_space<vmem>>, vector<64x32xf32>
    %cst = arith.constant dense<0.000000e+00> : vector<504x32xf32>
    %2 = tpu.matmul %0, %1, %cst {dimension_numbers = #tpu.dot_dimension_numbers<[1], [0], [0], [1], [0, 0, 1, 1], [], []>} : vector<504x64xf32>, vector<64x32xf32>, vector<504x32xf32> -> vector<504x32xf32>
    %c0_3 = arith.constant 0 : index
    %c0_4 = arith.constant 0 : index
    %3 = vector.load %arg4[%c0_3, %c0_4] : memref<1x32xf32, #tpu.memory_space<vmem>>, vector<1x32xf32>
    %4 = vector.broadcast %3 : vector<1x32xf32> to vector<504x32xf32>
    %5 = arith.addf %2, %4 : vector<504x32xf32>
    %6 = arith.negf %5 : vector<504x32xf32>
    %7 = math.exp %6 : vector<504x32xf32>
    %cst_5 = arith.constant 1.000000e+00 : f32
    %8 = vector.broadcast %cst_5 : f32 to vector<504x32xf32>
    %9 = arith.addf %8, %7 : vector<504x32xf32>
    %10 = arith.divf %8, %9 : vector<504x32xf32>
    %11 = arith.mulf %5, %10 : vector<504x32xf32>
    %c0_6 = arith.constant 0 : index
    %c0_7 = arith.constant 0 : index
    %12 = vector.load %arg5[%c0_6, %c0_7] : memref<1x32xf32, #tpu.memory_space<vmem>>, vector<1x32xf32>
    %cst_8 = arith.constant dense<0.000000e+00> : vector<1x504xf32>
    %13 = tpu.matmul %12, %11, %cst_8 {dimension_numbers = #tpu.dot_dimension_numbers<[1], [1], [0], [0], [0, 0, 1, 0], [], []>} : vector<1x32xf32>, vector<504x32xf32>, vector<1x504xf32> -> vector<1x504xf32>
    %c0_9 = arith.constant 0 : index
    %c0_10 = arith.constant 0 : index
    %14 = vector.load %arg6[%c0_9, %c0_10] : memref<1x1xf32, #tpu.memory_space<vmem>>, vector<1x1xf32>
    %15 = vector.broadcast %14 : vector<1x1xf32> to vector<1x504xf32>
    %16 = arith.addf %13, %15 : vector<1x504xf32>
    %c0_11 = arith.constant 0 : index
    %c0_12 = arith.constant 0 : index
    %17 = vector.load %arg7[%c0_11, %c0_12] : memref<1x64xf32, #tpu.memory_space<vmem>>, vector<1x64xf32>
    %cst_13 = arith.constant dense<0.000000e+00> : vector<1x504xf32>
    %18 = tpu.matmul %17, %0, %cst_13 {dimension_numbers = #tpu.dot_dimension_numbers<[1], [1], [0], [0], [0, 0, 1, 0], [], []>} : vector<1x64xf32>, vector<504x64xf32>, vector<1x504xf32> -> vector<1x504xf32>
    %c0_14 = arith.constant 0 : index
    %c0_15 = arith.constant 0 : index
    %19 = vector.load %arg8[%c0_14, %c0_15] : memref<1x1xf32, #tpu.memory_space<vmem>>, vector<1x1xf32>
    %20 = vector.broadcast %19 : vector<1x1xf32> to vector<1x504xf32>
    %21 = arith.addf %18, %20 : vector<1x504xf32>
    %22 = arith.mulf %16, %21 : vector<1x504xf32>
    %23 = tpu.iota {dimensions = array<i32: 1>} : vector<1x504xi32>
    %c504_i32 = arith.constant 504 : i32
    %24 = arith.muli %arg0, %c504_i32 : i32
    %25 = vector.broadcast %24 : i32 to vector<1x504xi32>
    %26 = arith.addi %23, %25 : vector<1x504xi32>
    %c1000_i32 = arith.constant 1000 : i32
    %27 = vector.broadcast %c1000_i32 : i32 to vector<1x504xi32>
    %28 = arith.cmpi slt, %26, %27 : vector<1x504xi32>
    %cst_16 = arith.constant 0.000000e+00 : f32
    %29 = vector.broadcast %cst_16 : f32 to vector<1x504xf32>
    %30 = arith.select %28, %22, %29 : vector<1x504xi1>, vector<1x504xf32>
    %31 = tpu.iota {dimensions = array<i32: 0>} : vector<8x504xi32>
    %c0_17 = arith.constant 0 : index
    %c0_18 = arith.constant 0 : index
    %c0_19 = arith.constant 0 : index
    %32 = vector.load %arg2[%c0_17, %c0_18, %c0_19] : memref<1x1x504xi32, #tpu.memory_space<vmem>>, vector<1x1x504xi32>
    %33 = vector.shape_cast %32 : vector<1x1x504xi32> to vector<1x504xi32>
    %34 = vector.broadcast %33 : vector<1x504xi32> to vector<8x504xi32>
    %35 = arith.cmpi eq, %34, %31 : vector<8x504xi32>
    %cst_20 = arith.constant 0.000000e+00 : f32
    %36 = vector.shape_cast %30 : vector<1x504xf32> to vector<1x504xf32>
    %37 = vector.broadcast %36 : vector<1x504xf32> to vector<8x504xf32>
    %38 = vector.broadcast %cst_20 : f32 to vector<8x504xf32>
    %39 = arith.select %35, %37, %38 : vector<8x504xi1>, vector<8x504xf32>
    %cst_21 = arith.constant dense<0.000000e+00> : vector<8xf32>
    %40 = vector.multi_reduction <add>, %39, %cst_21 [1] : vector<8x504xf32> to vector<8xf32>
    %41 = vector.shape_cast %40 : vector<8xf32> to vector<8x1xf32>
    %c0_22 = arith.constant 0 : index
    %c0_23 = arith.constant 0 : index
    %c0_24 = arith.constant 0 : index
    %42 = vector.load %arg9[%c0_22, %c0_23, %c0_24] : memref<1x8x1xf32, #tpu.memory_space<vmem>>, vector<1x8x1xf32>
    %43 = vector.shape_cast %42 : vector<1x8x1xf32> to vector<8x1xf32>
    %44 = vector.shape_cast %41 : vector<8x1xf32> to vector<1x8x1xf32>
    tpu.vector_store %arg9[%c0_22, %c0_23, %c0_24], %44 {strides = array<i32>} : memref<1x8x1xf32, #tpu.memory_space<vmem>>, vector<1x8x1xf32>,
    return
  }
  func.func @transform_0(%arg0: i32) -> (i32, i32) {
    %c0_i32 = arith.constant 0 : i32
    %c0_i32_0 = arith.constant 0 : i32
    return %arg0, %c0_i32 : i32, i32
  }
  func.func @transform_1(%arg0: i32) -> (i32, i32, i32) {
    %c0_i32 = arith.constant 0 : i32
    %c0_i32_0 = arith.constant 0 : i32
    %c0_i32_1 = arith.constant 0 : i32
    return %arg0, %c0_i32, %c0_i32_0 : i32, i32, i32
  }
  func.func @transform_2(%arg0: i32) -> (i32, i32) {
    %c0_i32 = arith.constant 0 : i32
    %c0_i32_0 = arith.constant 0 : i32
    %c0_i32_1 = arith.constant 0 : i32
    return %c0_i32, %c0_i32_0 : i32, i32
  }
  func.func @transform_3(%arg0: i32) -> (i32, i32) {
    %c0_i32 = arith.constant 0 : i32
    %c0_i32_0 = arith.constant 0 : i32
    %c0_i32_1 = arith.constant 0 : i32
    return %c0_i32, %c0_i32_0 : i32, i32
  }
  func.func @transform_4(%arg0: i32) -> (i32, i32) {
    %c0_i32 = arith.constant 0 : i32
    %c0_i32_0 = arith.constant 0 : i32
    %c0_i32_1 = arith.constant 0 : i32
    return %c0_i32, %c0_i32_0 : i32, i32
  }
  func.func @transform_5(%arg0: i32) -> (i32, i32) {
    %c0_i32 = arith.constant 0 : i32
    %c0_i32_0 = arith.constant 0 : i32
    %c0_i32_1 = arith.constant 0 : i32
    return %c0_i32, %c0_i32_0 : i32, i32
  }
  func.func @transform_6(%arg0: i32) -> (i32, i32) {
    %c0_i32 = arith.constant 0 : i32
    %c0_i32_0 = arith.constant 0 : i32
    %c0_i32_1 = arith.constant 0 : i32
    return %c0_i32, %c0_i32_0 : i32, i32
  }
  func.func @transform_7(%arg0: i32) -> (i32, i32) {
    %c0_i32 = arith.constant 0 : i32
    %c0_i32_0 = arith.constant 0 : i32
    %c0_i32_1 = arith.constant 0 : i32
    return %c0_i32, %c0_i32_0 : i32, i32
  }
  func.func @transform_8(%arg0: i32) -> (i32, i32, i32) {
    %c0_i32 = arith.constant 0 : i32
    %c0_i32_0 = arith.constant 0 : i32
    %c0_i32_1 = arith.constant 0 : i32
    return %arg0, %c0_i32, %c0_i32_0 : i32, i32, i32
  }
}

</mosaic_0001>

<llo_original>
// kernel: output_block_forward.1
$region0: #{output_block_forward.1}
  #allocation0 [shape = 'u32[]', space=smem, size = 0x4, offset = 0x4, fixed_abs, tag = 'smem constant byte address 0x4 - core index']
  #allocation1 [shape = 'u32[144,128]{1,0:T(1,128)}', space=vmem, size = 0x12000, scoped, tag = 'internal scratch']
  #allocation2 [shape = 'f32[1,1]{1,0:T(1,128)S(1)}', space=vmem, size = 0x200, scoped, tag = 'scoped memory for output_block_forward.1']
  #allocation3 [shape = 'f32[1,1]{1,0:T(1,128)S(1)}', space=vmem, size = 0x200, scoped, tag = 'scoped memory for output_block_forward.1']
  %s0 = inlined_call_operand.vmem [shape: f32[1000,64], index: 0, kind: input, shape index: {}]
  %s1 = inlined_call_operand.vmem [shape: s32[2,1,504], index: 1, kind: input, shape index: {}]
  %s2 = inlined_call_operand.vmem [shape: f32[64,32], index: 2, kind: input, shape index: {}]
  %s3 = inlined_call_operand.vmem [shape: f32[1,32], index: 3, kind: input, shape index: {}]
  %s4 = inlined_call_operand.vmem [shape: f32[1,32], index: 4, kind: input, shape index: {}]
  %s5 = inlined_call_operand.<no memory space> [shape: f32[1,1], index: 5, kind: input, shape index: {}]
  %s6 = inlined_call_operand.vmem [shape: f32[1,64], index: 6, kind: input, shape index: {}]
  %s7 = inlined_call_operand.<no memory space> [shape: f32[1,1], index: 7, kind: input, shape index: {}]
  %s8 = inlined_call_operand.vmem [shape: f32[2,8,1], index: 8, kind: output, shape index: {}]
  %s9 = sld [smem:[#allocation0]]
  $region65: #{output_block_forward.1} parent=0
    _
  %s11 = ssub.s32 1, %s9
  %s12 = scalar_select 0, %s11, %s9
  %v13 = vstv %s5
  %14 = vst [vmem:[#allocation2] sm:$0x1] %v13
  %v15 = vstv %s7
  %16 = vst [vmem:[#allocation3] sm:$0x1] %v15
  loop: start=0, step=1, limit=4
  $region2: #{output_block_forward.1} parent=0 // loop_pre_header
    _
  $region3: #{output_block_forward.1} parent=0 // loop_header
    %s18 = sphi 0, %s22
    %p19 = scmp.ge.s32.totalorder %s18, 4
    %s28 = sphi 0, %s30
    %s31 = sphi 0, %s28
    %s32 = sphi 0, %s31
    %s48 = sphi 0, %s32
    %s54 = sphi 0, %s56
    %s57 = sphi 0, %s54
    %s58 = sphi 0, %s57
    %s74 = sphi 0, %s58
    %s78 = sphi 0, %s78
    %s80 = sphi 0, %s78
    %s81 = sphi 0, %s80
    %s95 = sphi 0, %s81
    %s99 = sphi 0, %s99
    %s101 = sphi 0, %s99
    %s102 = sphi 0, %s101
    %s116 = sphi 0, %s102
    %s120 = sphi 0, %s120
    %s122 = sphi 0, %s120
    %s123 = sphi 0, %s122
    %s137 = sphi 0, %s123
    %s141 = sphi 0, %s141
    %s143 = sphi 0, %s141
    %s144 = sphi 0, %s143
    %s158 = sphi 0, %s144
    %s162 = sphi 0, %s162
    %s164 = sphi 0, %s162
    %s165 = sphi 0, %s164
    %s179 = sphi 0, %s165
    %s183 = sphi 0, %s183
    %s185 = sphi 0, %s183
    %s186 = sphi 0, %s185
    %s200 = sphi 0, %s186
    %s206 = sphi 0, %s208
    %s209 = sphi 0, %s206
    %s210 = sphi 0, %s209
    %s226 = sphi 0, %s210
  $region4: #{output_block_forward.1} parent=0 // loop_header_branch
    %21 = sbr.rel (%p19) target = $region8
  $region5: #{output_block_forward.1} parent=0 // loop_body
    %s23 = ssub.s32 %s18, 1
    %s24 = ssub.s32 %s18, 2
    %s25 = sadd.s32 %s18, 1
    %s26 = ssub.s32 %s18, %s25
    %p27 = scmp.eq.s32.totalorder %s26, 0
    %s29 = sadd.s32 %s28, 1
    %s30 = scalar_select %p27, %s28, %s29
    %p33 = pneg %p27
    %p34 = scmp.eq.s32.totalorder %s18, 1
    %p35 = por %p33, %p34
    %p36 = scmp.ne.s32.totalorder %s28, %s31
    %p37 = scmp.eq.s32.totalorder %s18, 0
    %p38 = por %p36, %p37
    %p39 = scmp.ne.s32.totalorder %s28, %s31
    %p40 = scmp.eq.s32.totalorder %s23, 1
    %p41 = por %p39, %p40
    %p42 = scmp.ne.s32.totalorder %s31, %s32
    %p43 = scmp.eq.s32.totalorder %s23, 0
    %p44 = por %p42, %p43
    %p45 = scmp.ne.s32.totalorder %s31, %s32
    %p46 = scmp.eq.s32.totalorder %s24, 1
    %p47 = por %p45, %p46
    %p49 = scmp.ne.s32.totalorder %s32, %s48
    %p50 = scmp.eq.s32.totalorder %s24, 0
    %p51 = por %p49, %p50
    %s52 = ssub.s32 %s18, %s25
    %p53 = scmp.eq.s32.totalorder %s52, 0
    %s55 = sadd.s32 %s54, 1
    %s56 = scalar_select %p53, %s54, %s55
    %p59 = pneg %p53
    %p60 = scmp.eq.s32.totalorder %s18, 1
    %p61 = por %p59, %p60
    %p62 = scmp.ne.s32.totalorder %s54, %s57
    %p63 = scmp.eq.s32.totalorder %s18, 0
    %p64 = por %p62, %p63
    %p65 = scmp.ne.s32.totalorder %s54, %s57
    %p66 = scmp.eq.s32.totalorder %s23, 1
    %p67 = por %p65, %p66
    %p68 = scmp.ne.s32.totalorder %s57, %s58
    %p69 = scmp.eq.s32.totalorder %s23, 0
    %p70 = por %p68, %p69
    %p71 = scmp.ne.s32.totalorder %s57, %s58
    %p72 = scmp.eq.s32.totalorder %s24, 1
    %p73 = por %p71, %p72
    %p75 = scmp.ne.s32.totalorder %s58, %s74
    %p76 = scmp.eq.s32.totalorder %s24, 0
    %p77 = por %p75, %p76
    %s79 = sadd.s32 %s78, 1
    %p82 = scmp.eq.s32.totalorder %s18, 1
    %p83 = scmp.ne.s32.totalorder %s78, %s80
    %p84 = scmp.eq.s32.totalorder %s18, 0
    %p85 = por %p83, %p84
    %p86 = scmp.ne.s32.totalorder %s78, %s80
    %p87 = scmp.eq.s32.totalorder %s23, 1
    %p88 = por %p86, %p87
    %p89 = scmp.ne.s32.totalorder %s80, %s81
    %p90 = scmp.eq.s32.totalorder %s23, 0
    %p91 = por %p89, %p90
    %p92 = scmp.ne.s32.totalorder %s80, %s81
    %p93 = scmp.eq.s32.totalorder %s24, 1
    %p94 = por %p92, %p93
    %p96 = scmp.ne.s32.totalorder %s81, %s95
    %p97 = scmp.eq.s32.totalorder %s24, 0
    %p98 = por %p96, %p97
    %s100 = sadd.s32 %s99, 1
    %p103 = scmp.eq.s32.totalorder %s18, 1
    %p104 = scmp.ne.s32.totalorder %s99, %s101
    %p105 = scmp.eq.s32.totalorder %s18, 0
    %p106 = por %p104, %p105
    %p107 = scmp.ne.s32.totalorder %s99, %s101
    %p108 = scmp.eq.s32.totalorder %s23, 1
    %p109 = por %p107, %p108
    %p110 = scmp.ne.s32.totalorder %s101, %s102
    %p111 = scmp.eq.s32.totalorder %s23, 0
    %p112 = por %p110, %p111
    %p113 = scmp.ne.s32.totalorder %s101, %s102
    %p114 = scmp.eq.s32.totalorder %s24, 1
    %p115 = por %p113, %p114
    %p117 = scmp.ne.s32.totalorder %s102, %s116
    %p118 = scmp.eq.s32.totalorder %s24, 0
    %p119 = por %p117, %p118
    %s121 = sadd.s32 %s120, 1
    %p124 = scmp.eq.s32.totalorder %s18, 1
    %p125 = scmp.ne.s32.totalorder %s120, %s122
    %p126 = scmp.eq.s32.totalorder %s18, 0
    %p127 = por %p125, %p126
    %p128 = scmp.ne.s32.totalorder %s120, %s122
    %p129 = scmp.eq.s32.totalorder %s23, 1
    %p130 = por %p128, %p129
    %p131 = scmp.ne.s32.totalorder %s122, %s123
    %p132 = scmp.eq.s32.totalorder %s23, 0
    %p133 = por %p131, %p132
    %p134 = scmp.ne.s32.totalorder %s122, %s123
    %p135 = scmp.eq.s32.totalorder %s24, 1
    %p136 = por %p134, %p135
    %p138 = scmp.ne.s32.totalorder %s123, %s137
    %p139 = scmp.eq.s32.totalorder %s24, 0
    %p140 = por %p138, %p139
    %s142 = sadd.s32 %s141, 1
    %p145 = scmp.eq.s32.totalorder %s18, 1
    %p146 = scmp.ne.s32.totalorder %s141, %s143
    %p147 = scmp.eq.s32.totalorder %s18, 0
    %p148 = por %p146, %p147
    %p149 = scmp.ne.s32.totalorder %s141, %s143
    %p150 = scmp.eq.s32.totalorder %s23, 1
    %p151 = por %p149, %p150
    %p152 = scmp.ne.s32.totalorder %s143, %s144
    %p153 = scmp.eq.s32.totalorder %s23, 0
    %p154 = por %p152, %p153
    %p155 = scmp.ne.s32.totalorder %s143, %s144
    %p156 = scmp.eq.s32.totalorder %s24, 1
    %p157 = por %p155, %p156
    %p159 = scmp.ne.s32.totalorder %s144, %s158
    %p160 = scmp.eq.s32.totalorder %s24, 0
    %p161 = por %p159, %p160
    %s163 = sadd.s32 %s162, 1
    %p166 = scmp.eq.s32.totalorder %s18, 1
    %p167 = scmp.ne.s32.totalorder %s162, %s164
    %p168 = scmp.eq.s32.totalorder %s18, 0
    %p169 = por %p167, %p168
    %p170 = scmp.ne.s32.totalorder %s162, %s164
    %p171 = scmp.eq.s32.totalorder %s23, 1
    %p172 = por %p170, %p171
    %p173 = scmp.ne.s32.totalorder %s164, %s165
    %p174 = scmp.eq.s32.totalorder %s23, 0
    %p175 = por %p173, %p174
    %p176 = scmp.ne.s32.totalorder %s164, %s165
    %p177 = scmp.eq.s32.totalorder %s24, 1
    %p178 = por %p176, %p177
    %p180 = scmp.ne.s32.totalorder %s165, %s179
    %p181 = scmp.eq.s32.totalorder %s24, 0
    %p182 = por %p180, %p181
    %s184 = sadd.s32 %s183, 1
    %p187 = scmp.eq.s32.totalorder %s18, 1
    %p188 = scmp.ne.s32.totalorder %s183, %s185
    %p189 = scmp.eq.s32.totalorder %s18, 0
    %p190 = por %p188, %p189
    %p191 = scmp.ne.s32.totalorder %s183, %s185
    %p192 = scmp.eq.s32.totalorder %s23, 1
    %p193 = por %p191, %p192
    %p194 = scmp.ne.s32.totalorder %s185, %s186
    %p195 = scmp.eq.s32.totalorder %s23, 0
    %p196 = por %p194, %p195
    %p197 = scmp.ne.s32.totalorder %s185, %s186
    %p198 = scmp.eq.s32.totalorder %s24, 1
    %p199 = por %p197, %p198
    %p201 = scmp.ne.s32.totalorder %s186, %s200
    %p202 = scmp.eq.s32.totalorder %s24, 0
    %p203 = por %p201, %p202
    %s204 = ssub.s32 %s18, %s25
    %p205 = scmp.eq.s32.totalorder %s204, 0
    %s207 = sadd.s32 %s206, 1
    %s208 = scalar_select %p205, %s206, %s207
    %p211 = pneg %p205
    %p212 = scmp.eq.s32.totalorder %s18, 1
    %p213 = por %p211, %p212
    %p214 = scmp.ne.s32.totalorder %s206, %s209
    %p215 = scmp.eq.s32.totalorder %s18, 0
    %p216 = por %p214, %p215
    %p217 = scmp.ne.s32.totalorder %s206, %s209
    %p218 = scmp.eq.s32.totalorder %s23, 1
    %p219 = por %p217, %p218
    %p220 = scmp.ne.s32.totalorder %s209, %s210
    %p221 = scmp.eq.s32.totalorder %s23, 0
    %p222 = por %p220, %p221
    %p223 = scmp.ne.s32.totalorder %s209, %s210
    %p224 = scmp.eq.s32.totalorder %s24, 1
    %p225 = por %p223, %p224
    %p227 = scmp.ne.s32.totalorder %s210, %s226
    %p228 = scmp.eq.s32.totalorder %s24, 0
    %p229 = por %p227, %p228
    %p230 = scmp.le.s32.totalorder 1, %s18
    %p231 = scmp.lt.s32.totalorder %s18, 3
    %p232 = pnand %p230, %p231
    %p233 = pneg %p232
    // Predicated region
    $region9: #{output_block_forward.1} parent=5 // pred_check
      _
    $region10: #{output_block_forward.1} parent=5 // pred_check_branch
      %235 = sbr.rel (%p232) target = $region12
    $region11: #{output_block_forward.1} parent=5 // pred_region
      %s236 = ssub.s32 %s18, 1
      // Predicated region
      $region13: #{output_block_forward.1} parent=11 // pred_check
        %p237 = pneg %p91
      $region14: #{output_block_forward.1} parent=11 // pred_check_branch
        %239 = sbr.rel (%p237) target = $region16
      $region15: #{output_block_forward.1} parent=11 // pred_region
        _
      $region16: #{output_block_forward.1} parent=11 // pred_fallthru
        _
      // Predicated region
      $region17: #{output_block_forward.1} parent=11 // pred_check
        %p240 = pneg %p112
      $region18: #{output_block_forward.1} parent=11 // pred_check_branch
        %242 = sbr.rel (%p240) target = $region20
      $region19: #{output_block_forward.1} parent=11 // pred_region
        _
      $region20: #{output_block_forward.1} parent=11 // pred_fallthru
        _
      // Predicated region
      $region21: #{output_block_forward.1} parent=11 // pred_check
        %p243 = pneg %p133
      $region22: #{output_block_forward.1} parent=11 // pred_check_branch
        %245 = sbr.rel (%p243) target = $region24
      $region23: #{output_block_forward.1} parent=11 // pred_region
        _
      $region24: #{output_block_forward.1} parent=11 // pred_fallthru
        _
      // Predicated region
      $region25: #{output_block_forward.1} parent=11 // pred_check
        %p246 = pneg %p154
      $region26: #{output_block_forward.1} parent=11 // pred_check_branch
        %248 = sbr.rel (%p246) target = $region28
      $region27: #{output_block_forward.1} parent=11 // pred_region
        _
      $region28: #{output_block_forward.1} parent=11 // pred_fallthru
        _
      // Predicated region
      $region29: #{output_block_forward.1} parent=11 // pred_check
        %p249 = pneg %p175
      $region30: #{output_block_forward.1} parent=11 // pred_check_branch
        %251 = sbr.rel (%p249) target = $region32
      $region31: #{output_block_forward.1} parent=11 // pred_region
        _
      $region32: #{output_block_forward.1} parent=11 // pred_fallthru
        _
      // Predicated region
      $region33: #{output_block_forward.1} parent=11 // pred_check
        %p252 = pneg %p196
      $region34: #{output_block_forward.1} parent=11 // pred_check_branch
        %254 = sbr.rel (%p252) target = $region36
      $region35: #{output_block_forward.1} parent=11 // pred_region
        _
      $region36: #{output_block_forward.1} parent=11 // pred_fallthru
        _
    $region12: #{output_block_forward.1} parent=5 // pred_fallthru
      _
    %p255 = scmp.lt.s32.totalorder %s18, 2
    // Predicated region
    $region37: #{output_block_forward.1} parent=5 // pred_check
      %p256 = pneg %p255
    $region38: #{output_block_forward.1} parent=5 // pred_check_branch
      %258 = sbr.rel (%p256) target = $region40
    $region39: #{output_block_forward.1} parent=5 // pred_region
      // Predicated region
      $region41: #{output_block_forward.1} parent=39 // pred_check
        %p259 = pneg %p38
      $region42: #{output_block_forward.1} parent=39 // pred_check_branch
        %261 = sbr.rel (%p259) target = $region44
      $region43: #{output_block_forward.1} parent=39 // pred_region
        %s262 = smul.u32 63, %s18
        %s263 = ssub.s32 125, %s262
        %p264 = scmp.lt.s32.totalorder %s263, 63
        %s265 = scalar_select %p264, %s263, 63
        %s266 = smul.u32 128, %s265
        %p267 = scmp.lt.s32.totalorder %s262, 124
        %s268 = scalar_select %p267, %s262, 124
        %s269 = smul.addr %s268, 8
        %s270 = scalar_lea.vmem %s0, %s269
        %s271 = smul.u32 63, %s18
        %s272 = ssub.s32 125, %s271
        %p273 = scmp.lt.s32.totalorder %s272, 63
        %s274 = scalar_select %p273, %s272, 63
        %s275 = smul.u32 128, %s274
      $region44: #{output_block_forward.1} parent=39 // pred_fallthru
        _
      // Predicated region
      $region45: #{output_block_forward.1} parent=39 // pred_check
        %p276 = pneg %p64
      $region46: #{output_block_forward.1} parent=39 // pred_check_branch
        %278 = sbr.rel (%p276) target = $region48
      $region47: #{output_block_forward.1} parent=39 // pred_region
        %p279 = scmp.lt.s32.totalorder %s18, 1
        %s280 = scalar_select %p279, %s18, 1
        %s281 = smul.addr %s280, 4
        %s282 = scalar_lea.vmem %s1, %s281
      $region48: #{output_block_forward.1} parent=39 // pred_fallthru
        _
    $region40: #{output_block_forward.1} parent=5 // pred_fallthru
      _
    %p283 = scmp.le.s32.totalorder 1, %s18
    %p284 = scmp.lt.s32.totalorder %s18, 3
    %p285 = pnand %p283, %p284
    %p286 = pneg %p285
    // Predicated region
    $region49: #{output_block_forward.1} parent=5 // pred_check
      _
    $region50: #{output_block_forward.1} parent=5 // pred_check_branch
      %288 = sbr.rel (%p285) target = $region52
    $region51: #{output_block_forward.1} parent=5 // pred_region
      %s289 = ssub.s32 %s18, 1
      %s290 = smul.u32 63, %s23
      %s291 = ssub.s32 125, %s290
      %p292 = scmp.lt.s32.totalorder %s291, 63
      %s293 = scalar_select %p292, %s291, 63
      %s294 = smul.u32 128, %s293
      %p295 = scmp.lt.s32.totalorder %s290, 124
      %s296 = scalar_select %p295, %s290, 124
      %s297 = smul.addr %s296, 8
      %s298 = scalar_lea.vmem %s0, %s297
      %p299 = pneg %p44
      %p300 = pneg %p41
      %p301 = scmp.lt.s32.totalorder %s23, 1
      %s302 = scalar_select %p301, %s23, 1
      %s303 = smul.addr %s302, 4
      %s304 = scalar_lea.vmem %s1, %s303
      %p305 = pneg %p70
      %p306 = pneg %p67
      %p307 = pneg %p91
      %p308 = pneg %p88
      %p309 = pneg %p112
      %p310 = pneg %p109
      %p311 = pneg %p133
      %p312 = pneg %p130
      %p313 = pneg %p154
      %p314 = pneg %p151
      %p315 = pneg %p175
      %p316 = pneg %p172
      %p317 = pneg %p196
      %p318 = pneg %p193
      %p319 = pneg %p222
      %p320 = pneg %p219
      %p321 = scmp.lt.s32.totalorder %s23, 1
      %s322 = scalar_select %p321, %s23, 1
      %s323 = smul.addr %s322, 8
      %s324 = scalar_lea.vmem %s8, %s323
      %s325 = smul.u32 63, %s23
      %s326 = ssub.s32 125, %s325
      %p327 = scmp.lt.s32.totalorder %s326, 63
      %s328 = scalar_select %p327, %s326, 63
      %s329 = smul.u32 128, %s328
      %p330 = scmp.lt.s32.totalorder %s325, 124
      %s331 = scalar_select %p330, %s325, 124
      %s332 = smul.addr %s331, 8
      %s333 = scalar_lea.vmem %s0, %s332
      %s334 = smul.u32 63, %s23
      %s335 = ssub.s32 125, %s334
      %p336 = scmp.lt.s32.totalorder %s335, 63
      %s337 = scalar_select %p336, %s335, 63
      %s338 = smul.u32 128, %s337
      %p339 = scmp.lt.s32.totalorder %s23, 1
      %s340 = scalar_select %p339, %s23, 1
      %s341 = smul.addr %s340, 4
      %s342 = scalar_lea.vmem %s1, %s341
      %p343 = scmp.lt.s32.totalorder %s23, 1
      %s344 = scalar_select %p343, %s23, 1
      %s345 = smul.addr %s344, 8
      %s346 = scalar_lea.vmem %s8, %s345
      %v347 = vld [vmem:[%s333] sm:$0xff]
      %v348 = vld [vmem:[%s333 + $0x8] sm:$0xff]
      %v349 = vld [vmem:[%s333 + $0x10] sm:$0xff]
      %v350 = vld [vmem:[%s333 + $0x18] sm:$0xff]
      %v351 = vld [vmem:[%s333 + $0x20] sm:$0xff]
      %v352 = vld [vmem:[%s333 + $0x28] sm:$0xff]
      %v353 = vld [vmem:[%s333 + $0x30] sm:$0xff]
      %v354 = vld [vmem:[%s333 + $0x38] sm:$0xff]
      %v355 = vld [vmem:[%s333 + $0x40] sm:$0xff]
      %v356 = vld [vmem:[%s333 + $0x48] sm:$0xff]
      %v357 = vld [vmem:[%s333 + $0x50] sm:$0xff]
      %v358 = vld [vmem:[%s333 + $0x58] sm:$0xff]
      %v359 = vld [vmem:[%s333 + $0x60] sm:$0xff]
      %v360 = vld [vmem:[%s333 + $0x68] sm:$0xff]
      %v361 = vld [vmem:[%s333 + $0x70] sm:$0xff]
      %v362 = vld [vmem:[%s333 + $0x78] sm:$0xff]
      %v363 = vld [vmem:[%s333 + $0x80] sm:$0xff]
      %v364 = vld [vmem:[%s333 + $0x88] sm:$0xff]
      %v365 = vld [vmem:[%s333 + $0x90] sm:$0xff]
      %v366 = vld [vmem:[%s333 + $0x98] sm:$0xff]
      %v367 = vld [vmem:[%s333 + $0xa0] sm:$0xff]
      %v368 = vld [vmem:[%s333 + $0xa8] sm:$0xff]
      %v369 = vld [vmem:[%s333 + $0xb0] sm:$0xff]
      %v370 = vld [vmem:[%s333 + $0xb8] sm:$0xff]
      %v371 = vld [vmem:[%s333 + $0xc0] sm:$0xff]
      %v372 = vld [vmem:[%s333 + $0xc8] sm:$0xff]
      %v373 = vld [vmem:[%s333 + $0xd0] sm:$0xff]
      %v374 = vld [vmem:[%s333 + $0xd8] sm:$0xff]
      %v375 = vld [vmem:[%s333 + $0xe0] sm:$0xff]
      %v376 = vld [vmem:[%s333 + $0xe8] sm:$0xff]
      %v377 = vld [vmem:[%s333 + $0xf0] sm:$0xff]
      %v378 = vld [vmem:[%s333 + $0xf8] sm:$0xff]
      %v379 = vld [vmem:[%s333 + $0x100] sm:$0xff]
      %v380 = vld [vmem:[%s333 + $0x108] sm:$0xff]
      %v381 = vld [vmem:[%s333 + $0x110] sm:$0xff]
      %v382 = vld [vmem:[%s333 + $0x118] sm:$0xff]
      %v383 = vld [vmem:[%s333 + $0x120] sm:$0xff]
      %v384 = vld [vmem:[%s333 + $0x128] sm:$0xff]
      %v385 = vld [vmem:[%s333 + $0x130] sm:$0xff]
      %v386 = vld [vmem:[%s333 + $0x138] sm:$0xff]
      %v387 = vld [vmem:[%s333 + $0x140] sm:$0xff]
      %v388 = vld [vmem:[%s333 + $0x148] sm:$0xff]
      %v389 = vld [vmem:[%s333 + $0x150] sm:$0xff]
      %v390 = vld [vmem:[%s333 + $0x158] sm:$0xff]
      %v391 = vld [vmem:[%s333 + $0x160] sm:$0xff]
      %v392 = vld [vmem:[%s333 + $0x168] sm:$0xff]
      %v393 = vld [vmem:[%s333 + $0x170] sm:$0xff]
      %v394 = vld [vmem:[%s333 + $0x178] sm:$0xff]
      %v395 = vld [vmem:[%s333 + $0x180] sm:$0xff]
      %v396 = vld [vmem:[%s333 + $0x188] sm:$0xff]
      %v397 = vld [vmem:[%s333 + $0x190] sm:$0xff]
      %v398 = vld [vmem:[%s333 + $0x198] sm:$0xff]
      %v399 = vld [vmem:[%s333 + $0x1a0] sm:$0xff]
      %v400 = vld [vmem:[%s333 + $0x1a8] sm:$0xff]
      %v401 = vld [vmem:[%s333 + $0x1b0] sm:$0xff]
      %v402 = vld [vmem:[%s333 + $0x1b8] sm:$0xff]
      %v403 = vld [vmem:[%s333 + $0x1c0] sm:$0xff]
      %v404 = vld [vmem:[%s333 + $0x1c8] sm:$0xff]
      %v405 = vld [vmem:[%s333 + $0x1d0] sm:$0xff]
      %v406 = vld [vmem:[%s333 + $0x1d8] sm:$0xff]
      %v407 = vld [vmem:[%s333 + $0x1e0] sm:$0xff]
      %v408 = vld [vmem:[%s333 + $0x1e8] sm:$0xff]
      %v409 = vld [vmem:[%s333 + $0x1f0] sm:$0xff]
      %v410 = vld [vmem:[%s2] sm:$0xff]
      %v411 = vld [vmem:[%s2 + $0x8] sm:$0xff]
      %v412 = vld [vmem:[%s2 + $0x10] sm:$0xff]
      %v413 = vld [vmem:[%s2 + $0x18] sm:$0xff]
      %v414 = vld [vmem:[%s2 + $0x20] sm:$0xff]
      %v415 = vld [vmem:[%s2 + $0x28] sm:$0xff]
      %v416 = vld [vmem:[%s2 + $0x30] sm:$0xff]
      %v417 = vld [vmem:[%s2 + $0x38] sm:$0xff]
      %v418 = vld [vmem:[%s3] sm:$0x1]
      %v420 = vlaneseq
      %v421 = vshrl.u32 %v420, 7
      %v422 = vsub.s32 0, %v421
      %v423 = vrot.slane %v418, %v422
      %vm425 = vcmask 523264
      %v427 = vsel %vm425, %v347, 0
      %v430 = vsel %vm425, %v348, 0
      %v433 = vsel %vm425, %v349, 0
      %v436 = vsel %vm425, %v350, 0
      %v439 = vsel %vm425, %v351, 0
      %v442 = vsel %vm425, %v352, 0
      %v445 = vsel %vm425, %v353, 0
      %v448 = vsel %vm425, %v354, 0
      %v451 = vsel %vm425, %v355, 0
      %v454 = vsel %vm425, %v356, 0
      %v457 = vsel %vm425, %v357, 0
      %v460 = vsel %vm425, %v358, 0
      %v463 = vsel %vm425, %v359, 0
      %v466 = vsel %vm425, %v360, 0
      %v469 = vsel %vm425, %v361, 0
      %v472 = vsel %vm425, %v362, 0
      %v475 = vsel %vm425, %v363, 0
      %v478 = vsel %vm425, %v364, 0
      %v481 = vsel %vm425, %v365, 0
      %v484 = vsel %vm425, %v366, 0
      %v487 = vsel %vm425, %v367, 0
      %v490 = vsel %vm425, %v368, 0
      %v493 = vsel %vm425, %v369, 0
      %v496 = vsel %vm425, %v370, 0
      %v499 = vsel %vm425, %v371, 0
      %v502 = vsel %vm425, %v372, 0
      %v505 = vsel %vm425, %v373, 0
      %v508 = vsel %vm425, %v374, 0
      %v511 = vsel %vm425, %v375, 0
      %v514 = vsel %vm425, %v376, 0
      %v517 = vsel %vm425, %v377, 0
      %v520 = vsel %vm425, %v378, 0
      %v523 = vsel %vm425, %v379, 0
      %v526 = vsel %vm425, %v380, 0
      %v529 = vsel %vm425, %v381, 0
      %v532 = vsel %vm425, %v382, 0
      %v535 = vsel %vm425, %v383, 0
      %v538 = vsel %vm425, %v384, 0
      %v541 = vsel %vm425, %v385, 0
      %v544 = vsel %vm425, %v386, 0
      %v547 = vsel %vm425, %v387, 0
      %v550 = vsel %vm425, %v388, 0
      %v553 = vsel %vm425, %v389, 0
      %v556 = vsel %vm425, %v390, 0
      %v559 = vsel %vm425, %v391, 0
      %v562 = vsel %vm425, %v392, 0
      %v565 = vsel %vm425, %v393, 0
      %v568 = vsel %vm425, %v394, 0
      %v571 = vsel %vm425, %v395, 0
      %v574 = vsel %vm425, %v396, 0
      %v577 = vsel %vm425, %v397, 0
      %v580 = vsel %vm425, %v398, 0
      %v583 = vsel %vm425, %v399, 0
      %v586 = vsel %vm425, %v400, 0
      %v589 = vsel %vm425, %v401, 0
      %v592 = vsel %vm425, %v402, 0
      %v595 = vsel %vm425, %v403, 0
      %v598 = vsel %vm425, %v404, 0
      %v601 = vsel %vm425, %v405, 0
      %v604 = vsel %vm425, %v406, 0
      %v607 = vsel %vm425, %v407, 0
      %v610 = vsel %vm425, %v408, 0
      %v613 = vsel %vm425, %v409, 0
      %615 = vmatprep.subr.mxu0 0.0
      %616 = vmatpush1.msra.mxu0 %v410
      %617 = vmatprep.subr.mxu0 0.0
      %618 = vmatpush1.msra.mxu0 %v411
      %619 = vmatprep.subr.mxu0 0.0
      %620 = vmatpush1.msra.mxu0 %v412
      %621 = vmatprep.subr.mxu0 0.0
      %622 = vmatpush1.msra.mxu0 %v413
      %623 = vmatprep.subr.mxu0 0.0
      %624 = vmatpush1.msra.mxu0 %v414
      %625 = vmatprep.subr.mxu0 0.0
      %626 = vmatpush1.msra.mxu0 %v415
      %627 = vmatprep.subr.mxu0 0.0
      %628 = vmatpush1.msra.mxu0 %v416
      %629 = vmatprep.subr.mxu0 0.0
      %630 = vmatpush1.msra.mxu0 %v417
      %631 = vmatprep.subr.mxu0 0.0
      %632 = vmatpush1.msra.mxu0 0.0
      %633 = vmatprep.subr.mxu0 0.0
      %634 = vmatpush1.msra.mxu0 0.0
      %635 = vmatprep.subr.mxu0 0.0
      %636 = vmatpush1.msra.mxu0 0.0
      %637 = vmatprep.subr.mxu0 0.0
      %638 = vmatpush1.msra.mxu0 0.0
      %639 = vmatprep.subr.mxu0 0.0
      %640 = vmatpush1.msra.mxu0 0.0
      %641 = vmatprep.subr.mxu0 0.0
      %642 = vmatpush1.msra.mxu0 0.0
      %643 = vmatprep.subr.mxu0 0.0
      %644 = vmatpush1.msra.mxu0 0.0
      %645 = vmatprep.subr.mxu0 0.0
      %646 = vmatpush1.msra.mxu0 0.0
      %647 = vmatprep.subr.mxu0 0.0
      %648 = vmatpush1.msra.mxu0 0.0
      %649 = vmatprep.subr.mxu0 0.0
      %650 = vmatpush1.msra.mxu0 0.0
      %651 = vmatprep.subr.mxu0 0.0
      %652 = vmatpush1.msra.mxu0 0.0
      %653 = vmatprep.subr.mxu0 0.0
      %654 = vmatpush1.msra.mxu0 0.0
      %655 = vmatprep.subr.mxu0 0.0
      %656 = vmatpush1.msra.mxu0 0.0
      %657 = vmatprep.subr.mxu0 0.0
      %658 = vmatpush1.msra.mxu0 0.0
      %659 = vmatprep.subr.mxu0 0.0
      %660 = vmatpush1.msra.mxu0 0.0
      %661 = vmatprep.subr.mxu0 0.0
      %662 = vmatpush1.msra.mxu0 0.0
      %663 = vmatprep.subr.mxu0 0.0
      %664 = vmatpush1.msra.mxu0 0.0
      %665 = vmatprep.subr.mxu0 0.0
      %666 = vmatpush1.msra.mxu0 0.0
      %667 = vmatprep.subr.mxu0 0.0
      %668 = vmatpush1.msra.mxu0 0.0
      %669 = vmatprep.subr.mxu0 0.0
      %670 = vmatpush1.msra.mxu0 0.0
      %671 = vmatprep.subr.mxu0 0.0
      %672 = vmatpush1.msra.mxu0 0.0
      %673 = vmatprep.subr.mxu0 0.0
      %674 = vmatpush1.msra.mxu0 0.0
      %675 = vmatprep.subr.mxu0 0.0
      %676 = vmatpush1.msra.mxu0 0.0
      %677 = vmatprep.subr.mxu0 0.0
      %678 = vmatpush1.msra.mxu0 0.0
      %679 = vmatprep.mubr.f32.mxu0 0.0
      %680 = vmatmul.mubr.f32.gmra.mrb[0].mxu0 %v427
      %v681 = vpop.f32.mrb[0].mxu0
      %v682 = vadd.f32 %v423, %v681
      %v683 = vpop.f32.mrb[0].mxu0
      %684 = vmatprep.mubr.f32.mxu0 0.0
      %685 = vmatmul.mubr.f32.gmra.mrb[0].mxu0 %v430
      %v686 = vpop.f32.mrb[0].mxu0
      %v687 = vadd.f32 %v423, %v686
      %v688 = vpop.f32.mrb[0].mxu0
      %689 = vmatprep.mubr.f32.mxu0 0.0
      %690 = vmatmul.mubr.f32.gmra.mrb[0].mxu0 %v433
      %v691 = vpop.f32.mrb[0].mxu0
      %v692 = vadd.f32 %v423, %v691
      %v693 = vpop.f32.mrb[0].mxu0
      %694 = vmatprep.mubr.f32.mxu0 0.0
      %695 = vmatmul.mubr.f32.gmra.mrb[0].mxu0 %v436
      %v696 = vpop.f32.mrb[0].mxu0
      %v697 = vadd.f32 %v423, %v696
      %v698 = vpop.f32.mrb[0].mxu0
      %699 = vmatprep.mubr.f32.mxu0 0.0
      %700 = vmatmul.mubr.f32.gmra.mrb[0].mxu0 %v439
      %v701 = vpop.f32.mrb[0].mxu0
      %v702 = vadd.f32 %v423, %v701
      %v703 = vpop.f32.mrb[0].mxu0
      %704 = vmatprep.mubr.f32.mxu0 0.0
      %705 = vmatmul.mubr.f32.gmra.mrb[0].mxu0 %v442
      %v706 = vpop.f32.mrb[0].mxu0
      %v707 = vadd.f32 %v423, %v706
      %v708 = vpop.f32.mrb[0].mxu0
      %709 = vmatprep.mubr.f32.mxu0 0.0
      %710 = vmatmul.mubr.f32.gmra.mrb[0].mxu0 %v445
      %v711 = vpop.f32.mrb[0].mxu0
      %v712 = vadd.f32 %v423, %v711
      %v713 = vpop.f32.mrb[0].mxu0
      %714 = vmatprep.mubr.f32.mxu0 0.0
      %715 = vmatmul.mubr.f32.gmra.mrb[0].mxu0 %v448
      %v716 = vpop.f32.mrb[0].mxu0
      %v717 = vadd.f32 %v423, %v716
      %v718 = vpop.f32.mrb[0].mxu0
      %719 = vmatprep.mubr.f32.mxu0 0.0
      %720 = vmatmul.mubr.f32.gmra.mrb[0].mxu0 %v451
      %v721 = vpop.f32.mrb[0].mxu0
      %v722 = vadd.f32 %v423, %v721
      %v723 = vpop.f32.mrb[0].mxu0
      %724 = vmatprep.mubr.f32.mxu0 0.0
      %725 = vmatmul.mubr.f32.gmra.mrb[0].mxu0 %v454
      %v726 = vpop.f32.mrb[0].mxu0
      %v727 = vadd.f32 %v423, %v726
      %v728 = vpop.f32.mrb[0].mxu0
      %729 = vmatprep.mubr.f32.mxu0 0.0
      %730 = vmatmul.mubr.f32.gmra.mrb[0].mxu0 %v457
      %v731 = vpop.f32.mrb[0].mxu0
      %v732 = vadd.f32 %v423, %v731
      %v733 = vpop.f32.mrb[0].mxu0
      %734 = vmatprep.mubr.f32.mxu0 0.0
      %735 = vmatmul.mubr.f32.gmra.mrb[0].mxu0 %v460
      %v736 = vpop.f32.mrb[0].mxu0
      %v737 = vadd.f32 %v423, %v736
      %v738 = vpop.f32.mrb[0].mxu0
      %739 = vmatprep.mubr.f32.mxu0 0.0
      %740 = vmatmul.mubr.f32.gmra.mrb[0].mxu0 %v463
      %v741 = vpop.f32.mrb[0].mxu0
      %v742 = vadd.f32 %v423, %v741
      %v743 = vpop.f32.mrb[0].mxu0
      %744 = vmatprep.mubr.f32.mxu0 0.0
      %745 = vmatmul.mubr.f32.gmra.mrb[0].mxu0 %v466
      %v746 = vpop.f32.mrb[0].mxu0
      %v747 = vadd.f32 %v423, %v746
      %v748 = vpop.f32.mrb[0].mxu0
      %749 = vmatprep.mubr.f32.mxu0 0.0
      %750 = vmatmul.mubr.f32.gmra.mrb[0].mxu0 %v469
      %v751 = vpop.f32.mrb[0].mxu0
      %v752 = vadd.f32 %v423, %v751
      %v753 = vpop.f32.mrb[0].mxu0
      %754 = vmatprep.mubr.f32.mxu0 0.0
      %755 = vmatmul.mubr.f32.gmra.mrb[0].mxu0 %v472
      %v756 = vpop.f32.mrb[0].mxu0
      %v757 = vadd.f32 %v423, %v756
      %v758 = vpop.f32.mrb[0].mxu0
      %759 = vmatprep.mubr.f32.mxu0 0.0
      %760 = vmatmul.mubr.f32.gmra.mrb[0].mxu0 %v475
      %v761 = vpop.f32.mrb[0].mxu0
      %v762 = vadd.f32 %v423, %v761
      %v763 = vpop.f32.mrb[0].mxu0
      %764 = vmatprep.mubr.f32.mxu0 0.0
      %765 = vmatmul.mubr.f32.gmra.mrb[0].mxu0 %v478
      %v766 = vpop.f32.mrb[0].mxu0
      %v767 = vadd.f32 %v423, %v766
      %v768 = vpop.f32.mrb[0].mxu0
      %769 = vmatprep.mubr.f32.mxu0 0.0
      %770 = vmatmul.mubr.f32.gmra.mrb[0].mxu0 %v481
      %v771 = vpop.f32.mrb[0].mxu0
      %v772 = vadd.f32 %v423, %v771
      %v773 = vpop.f32.mrb[0].mxu0
      %774 = vmatprep.mubr.f32.mxu0 0.0
      %775 = vmatmul.mubr.f32.gmra.mrb[0].mxu0 %v484
      %v776 = vpop.f32.mrb[0].mxu0
      %v777 = vadd.f32 %v423, %v776
      %v778 = vpop.f32.mrb[0].mxu0
      %779 = vmatprep.mubr.f32.mxu0 0.0
      %780 = vmatmul.mubr.f32.gmra.mrb[0].mxu0 %v487
      %v781 = vpop.f32.mrb[0].mxu0
      %v782 = vadd.f32 %v423, %v781
      %v783 = vpop.f32.mrb[0].mxu0
      %784 = vmatprep.mubr.f32.mxu0 0.0
      %785 = vmatmul.mubr.f32.gmra.mrb[0].mxu0 %v490
      %v786 = vpop.f32.mrb[0].mxu0
      %v787 = vadd.f32 %v423, %v786
      %v788 = vpop.f32.mrb[0].mxu0
      %789 = vmatprep.mubr.f32.mxu0 0.0
      %790 = vmatmul.mubr.f32.gmra.mrb[0].mxu0 %v493
      %v791 = vpop.f32.mrb[0].mxu0
      %v792 = vadd.f32 %v423, %v791
      %v793 = vpop.f32.mrb[0].mxu0
      %794 = vmatprep.mubr.f32.mxu0 0.0
      %795 = vmatmul.mubr.f32.gmra.mrb[0].mxu0 %v496
      %v796 = vpop.f32.mrb[0].mxu0
      %v797 = vadd.f32 %v423, %v796
      %v798 = vpop.f32.mrb[0].mxu0
      %799 = vmatprep.mubr.f32.mxu0 0.0
      %800 = vmatmul.mubr.f32.gmra.mrb[0].mxu0 %v499
      %v801 = vpop.f32.mrb[0].mxu0
      %v802 = vadd.f32 %v423, %v801
      %v803 = vpop.f32.mrb[0].mxu0
      %804 = vmatprep.mubr.f32.mxu0 0.0
      %805 = vmatmul.mubr.f32.gmra.mrb[0].mxu0 %v502
      %v806 = vpop.f32.mrb[0].mxu0
      %v807 = vadd.f32 %v423, %v806
      %v808 = vpop.f32.mrb[0].mxu0
      %809 = vmatprep.mubr.f32.mxu0 0.0
      %810 = vmatmul.mubr.f32.gmra.mrb[0].mxu0 %v505
      %v811 = vpop.f32.mrb[0].mxu0
      %v812 = vadd.f32 %v423, %v811
      %v813 = vpop.f32.mrb[0].mxu0
      %814 = vmatprep.mubr.f32.mxu0 0.0
      %815 = vmatmul.mubr.f32.gmra.mrb[0].mxu0 %v508
      %v816 = vpop.f32.mrb[0].mxu0
      %v817 = vadd.f32 %v423, %v816
      %v818 = vpop.f32.mrb[0].mxu0
      %819 = vmatprep.mubr.f32.mxu0 0.0
      %820 = vmatmul.mubr.f32.gmra.mrb[0].mxu0 %v511
      %v821 = vpop.f32.mrb[0].mxu0
      %v822 = vadd.f32 %v423, %v821
      %v823 = vpop.f32.mrb[0].mxu0
      %824 = vmatprep.mubr.f32.mxu0 0.0
      %825 = vmatmul.mubr.f32.gmra.mrb[0].mxu0 %v514
      %v826 = vpop.f32.mrb[0].mxu0
      %v827 = vadd.f32 %v423, %v826
      %v828 = vpop.f32.mrb[0].mxu0
      %829 = vmatprep.mubr.f32.mxu0 0.0
      %830 = vmatmul.mubr.f32.gmra.mrb[0].mxu0 %v517
      %v831 = vpop.f32.mrb[0].mxu0
      %v832 = vadd.f32 %v423, %v831
      %v833 = vpop.f32.mrb[0].mxu0
      %834 = vmatprep.mubr.f32.mxu0 0.0
      %835 = vmatmul.mubr.f32.gmra.mrb[0].mxu0 %v520
      %v836 = vpop.f32.mrb[0].mxu0
      %v837 = vadd.f32 %v423, %v836
      %v838 = vpop.f32.mrb[0].mxu0
      %839 = vmatprep.mubr.f32.mxu0 0.0
      %840 = vmatmul.mubr.f32.gmra.mrb[0].mxu0 %v523
      %v841 = vpop.f32.mrb[0].mxu0
      %v842 = vadd.f32 %v423, %v841
      %v843 = vpop.f32.mrb[0].mxu0
      %844 = vmatprep.mubr.f32.mxu0 0.0
      %845 = vmatmul.mubr.f32.gmra.mrb[0].mxu0 %v526
      %v846 = vpop.f32.mrb[0].mxu0
      %v847 = vadd.f32 %v423, %v846
      %v848 = vpop.f32.mrb[0].mxu0
      %849 = vmatprep.mubr.f32.mxu0 0.0
      %850 = vmatmul.mubr.f32.gmra.mrb[0].mxu0 %v529
      %v851 = vpop.f32.mrb[0].mxu0
      %v852 = vadd.f32 %v423, %v851
      %v853 = vpop.f32.mrb[0].mxu0
      %854 = vmatprep.mubr.f32.mxu0 0.0
      %855 = vmatmul.mubr.f32.gmra.mrb[0].mxu0 %v532
      %v856 = vpop.f32.mrb[0].mxu0
      %v857 = vadd.f32 %v423, %v856
      %v858 = vpop.f32.mrb[0].mxu0
      %859 = vmatprep.mubr.f32.mxu0 0.0
      %860 = vmatmul.mubr.f32.gmra.mrb[0].mxu0 %v535
      %v861 = vpop.f32.mrb[0].mxu0
      %v862 = vadd.f32 %v423, %v861
      %v863 = vpop.f32.mrb[0].mxu0
      %864 = vmatprep.mubr.f32.mxu0 0.0
      %865 = vmatmul.mubr.f32.gmra.mrb[0].mxu0 %v538
      %v866 = vpop.f32.mrb[0].mxu0
      %v867 = vadd.f32 %v423, %v866
      %v868 = vpop.f32.mrb[0].mxu0
      %869 = vmatprep.mubr.f32.mxu0 0.0
      %870 = vmatmul.mubr.f32.gmra.mrb[0].mxu0 %v541
      %v871 = vpop.f32.mrb[0].mxu0
      %v872 = vadd.f32 %v423, %v871
      %v873 = vpop.f32.mrb[0].mxu0
      %874 = vmatprep.mubr.f32.mxu0 0.0
      %875 = vmatmul.mubr.f32.gmra.mrb[0].mxu0 %v544
      %v876 = vpop.f32.mrb[0].mxu0
      %v877 = vadd.f32 %v423, %v876
      %v878 = vpop.f32.mrb[0].mxu0
      %879 = vmatprep.mubr.f32.mxu0 0.0
      %880 = vmatmul.mubr.f32.gmra.mrb[0].mxu0 %v547
      %v881 = vpop.f32.mrb[0].mxu0
      %v882 = vadd.f32 %v423, %v881
      %v883 = vpop.f32.mrb[0].mxu0
      %884 = vmatprep.mubr.f32.mxu0 0.0
      %885 = vmatmul.mubr.f32.gmra.mrb[0].mxu0 %v550
      %v886 = vpop.f32.mrb[0].mxu0
      %v887 = vadd.f32 %v423, %v886
      %v888 = vpop.f32.mrb[0].mxu0
      %889 = vmatprep.mubr.f32.mxu0 0.0
      %890 = vmatmul.mubr.f32.gmra.mrb[0].mxu0 %v553
      %v891 = vpop.f32.mrb[0].mxu0
      %v892 = vadd.f32 %v423, %v891
      %v893 = vpop.f32.mrb[0].mxu0
      %894 = vmatprep.mubr.f32.mxu0 0.0
      %895 = vmatmul.mubr.f32.gmra.mrb[0].mxu0 %v556
      %v896 = vpop.f32.mrb[0].mxu0
      %v897 = vadd.f32 %v423, %v896
      %v898 = vpop.f32.mrb[0].mxu0
      %899 = vmatprep.mubr.f32.mxu0 0.0
      %900 = vmatmul.mubr.f32.gmra.mrb[0].mxu0 %v559
      %v901 = vpop.f32.mrb[0].mxu0
      %v902 = vadd.f32 %v423, %v901
      %v903 = vpop.f32.mrb[0].mxu0
      %904 = vmatprep.mubr.f32.mxu0 0.0
      %905 = vmatmul.mubr.f32.gmra.mrb[0].mxu0 %v562
      %v906 = vpop.f32.mrb[0].mxu0
      %v907 = vadd.f32 %v423, %v906
      %v908 = vpop.f32.mrb[0].mxu0
      %909 = vmatprep.mubr.f32.mxu0 0.0
      %910 = vmatmul.mubr.f32.gmra.mrb[0].mxu0 %v565
      %v911 = vpop.f32.mrb[0].mxu0
      %v912 = vadd.f32 %v423, %v911
      %v913 = vpop.f32.mrb[0].mxu0
      %914 = vmatprep.mubr.f32.mxu0 0.0
      %915 = vmatmul.mubr.f32.gmra.mrb[0].mxu0 %v568
      %v916 = vpop.f32.mrb[0].mxu0
      %v917 = vadd.f32 %v423, %v916
      %v918 = vpop.f32.mrb[0].mxu0
      %919 = vmatprep.mubr.f32.mxu0 0.0
      %920 = vmatmul.mubr.f32.gmra.mrb[0].mxu0 %v571
      %v921 = vpop.f32.mrb[0].mxu0
      %v922 = vadd.f32 %v423, %v921
      %v923 = vpop.f32.mrb[0].mxu0
      %924 = vmatprep.mubr.f32.mxu0 0.0
      %925 = vmatmul.mubr.f32.gmra.mrb[0].mxu0 %v574
      %v926 = vpop.f32.mrb[0].mxu0
      %v927 = vadd.f32 %v423, %v926
      %v928 = vpop.f32.mrb[0].mxu0
      %929 = vmatprep.mubr.f32.mxu0 0.0
      %930 = vmatmul.mubr.f32.gmra.mrb[0].mxu0 %v577
      %v931 = vpop.f32.mrb[0].mxu0
      %v932 = vadd.f32 %v423, %v931
      %v933 = vpop.f32.mrb[0].mxu0
      %934 = vmatprep.mubr.f32.mxu0 0.0
      %935 = vmatmul.mubr.f32.gmra.mrb[0].mxu0 %v580
      %v936 = vpop.f32.mrb[0].mxu0
      %v937 = vadd.f32 %v423, %v936
      %v938 = vpop.f32.mrb[0].mxu0
      %939 = vmatprep.mubr.f32.mxu0 0.0
      %940 = vmatmul.mubr.f32.gmra.mrb[0].mxu0 %v583
      %v941 = vpop.f32.mrb[0].mxu0
      %v942 = vadd.f32 %v423, %v941
      %v943 = vpop.f32.mrb[0].mxu0
      %944 = vmatprep.mubr.f32.mxu0 0.0
      %945 = vmatmul.mubr.f32.gmra.mrb[0].mxu0 %v586
      %v946 = vpop.f32.mrb[0].mxu0
      %v947 = vadd.f32 %v423, %v946
      %v948 = vpop.f32.mrb[0].mxu0
      %949 = vmatprep.mubr.f32.mxu0 0.0
      %950 = vmatmul.mubr.f32.gmra.mrb[0].mxu0 %v589
      %v951 = vpop.f32.mrb[0].mxu0
      %v952 = vadd.f32 %v423, %v951
      %v953 = vpop.f32.mrb[0].mxu0
      %954 = vmatprep.mubr.f32.mxu0 0.0
      %955 = vmatmul.mubr.f32.gmra.mrb[0].mxu0 %v592
      %v956 = vpop.f32.mrb[0].mxu0
      %v957 = vadd.f32 %v423, %v956
      %v958 = vpop.f32.mrb[0].mxu0
      %959 = vmatprep.mubr.f32.mxu0 0.0
      %960 = vmatmul.mubr.f32.gmra.mrb[0].mxu0 %v595
      %v961 = vpop.f32.mrb[0].mxu0
      %v962 = vadd.f32 %v423, %v961
      %v963 = vpop.f32.mrb[0].mxu0
      %964 = vmatprep.mubr.f32.mxu0 0.0
      %965 = vmatmul.mubr.f32.gmra.mrb[0].mxu0 %v598
      %v966 = vpop.f32.mrb[0].mxu0
      %v967 = vadd.f32 %v423, %v966
      %v968 = vpop.f32.mrb[0].mxu0
      %969 = vmatprep.mubr.f32.mxu0 0.0
      %970 = vmatmul.mubr.f32.gmra.mrb[0].mxu0 %v601
      %v971 = vpop.f32.mrb[0].mxu0
      %v972 = vadd.f32 %v423, %v971
      %v973 = vpop.f32.mrb[0].mxu0
      %974 = vmatprep.mubr.f32.mxu0 0.0
      %975 = vmatmul.mubr.f32.gmra.mrb[0].mxu0 %v604
      %v976 = vpop.f32.mrb[0].mxu0
      %v977 = vadd.f32 %v423, %v976
      %v978 = vpop.f32.mrb[0].mxu0
      %979 = vmatprep.mubr.f32.mxu0 0.0
      %980 = vmatmul.mubr.f32.gmra.mrb[0].mxu0 %v607
      %v981 = vpop.f32.mrb[0].mxu0
      %v982 = vadd.f32 %v423, %v981
      %v983 = vpop.f32.mrb[0].mxu0
      %984 = vmatprep.mubr.f32.mxu0 0.0
      %985 = vmatmul.mubr.f32.gmra.mrb[0].mxu0 %v610
      %v986 = vpop.f32.mrb[0].mxu0
      %v987 = vadd.f32 %v423, %v986
      %v988 = vpop.f32.mrb[0].mxu0
      %989 = vmatprep.mubr.f32.mxu0 0.0
      %990 = vmatmul.mubr.f32.gmra.mrb[0].mxu0 %v613
      %v991 = vpop.f32.mrb[0].mxu0
      %v992 = vadd.f32 %v423, %v991
      %v993 = vpop.f32.mrb[0].mxu0
      %994 = vdwg.mxu0
      %v995 = vxor.u32 %v682, 2147483648
      %v996 = vxor.u32 %v687, 2147483648
      %v997 = vxor.u32 %v692, 2147483648
      %v998 = vxor.u32 %v697, 2147483648
      %v999 = vxor.u32 %v702, 2147483648
      %v1000 = vxor.u32 %v707, 2147483648
      %v1001 = vxor.u32 %v712, 2147483648
      %v1002 = vxor.u32 %v717, 2147483648
      %v1003 = vxor.u32 %v722, 2147483648
      %v1004 = vxor.u32 %v727, 2147483648
      %v1005 = vxor.u32 %v732, 2147483648
      %v1006 = vxor.u32 %v737, 2147483648
      %v1007 = vxor.u32 %v742, 2147483648
      %v1008 = vxor.u32 %v747, 2147483648
      %v1009 = vxor.u32 %v752, 2147483648
      %v1010 = vxor.u32 %v757, 2147483648
      %v1011 = vxor.u32 %v762, 2147483648
      %v1012 = vxor.u32 %v767, 2147483648
      %v1013 = vxor.u32 %v772, 2147483648
      %v1014 = vxor.u32 %v777, 2147483648
      %v1015 = vxor.u32 %v782, 2147483648
      %v1016 = vxor.u32 %v787, 2147483648
      %v1017 = vxor.u32 %v792, 2147483648
      %v1018 = vxor.u32 %v797, 2147483648
      %v1019 = vxor.u32 %v802, 2147483648
      %v1020 = vxor.u32 %v807, 2147483648
      %v1021 = vxor.u32 %v812, 2147483648
      %v1022 = vxor.u32 %v817, 2147483648
      %v1023 = vxor.u32 %v822, 2147483648
      %v1024 = vxor.u32 %v827, 2147483648
      %v1025 = vxor.u32 %v832, 2147483648
      %v1026 = vxor.u32 %v837, 2147483648
      %v1027 = vxor.u32 %v842, 2147483648
      %v1028 = vxor.u32 %v847, 2147483648
      %v1029 = vxor.u32 %v852, 2147483648
      %v1030 = vxor.u32 %v857, 2147483648
      %v1031 = vxor.u32 %v862, 2147483648
      %v1032 = vxor.u32 %v867, 2147483648
      %v1033 = vxor.u32 %v872, 2147483648
      %v1034 = vxor.u32 %v877, 2147483648
      %v1035 = vxor.u32 %v882, 2147483648
      %v1036 = vxor.u32 %v887, 2147483648
      %v1037 = vxor.u32 %v892, 2147483648
      %v1038 = vxor.u32 %v897, 2147483648
      %v1039 = vxor.u32 %v902, 2147483648
      %v1040 = vxor.u32 %v907, 2147483648
      %v1041 = vxor.u32 %v912, 2147483648
      %v1042 = vxor.u32 %v917, 2147483648
      %v1043 = vxor.u32 %v922, 2147483648
      %v1044 = vxor.u32 %v927, 2147483648
      %v1045 = vxor.u32 %v932, 2147483648
      %v1046 = vxor.u32 %v937, 2147483648
      %v1047 = vxor.u32 %v942, 2147483648
      %v1048 = vxor.u32 %v947, 2147483648
      %v1049 = vxor.u32 %v952, 2147483648
      %v1050 = vxor.u32 %v957, 2147483648
      %v1051 = vxor.u32 %v962, 2147483648
      %v1052 = vxor.u32 %v967, 2147483648
      %v1053 = vxor.u32 %v972, 2147483648
      %v1054 = vxor.u32 %v977, 2147483648
      %v1055 = vxor.u32 %v982, 2147483648
      %v1056 = vxor.u32 %v987, 2147483648
      %v1057 = vxor.u32 %v992, 2147483648
      %v1058 = vmul.f32 %v995, 1.442695
      %v1059 = vpow.pop %v1058
      %v1060 = vmul.f32 %v996, 1.442695
      %v1061 = vpow.pop %v1060
      %v1062 = vmul.f32 %v997, 1.442695
      %v1063 = vpow.pop %v1062
      %v1064 = vmul.f32 %v998, 1.442695
      %v1065 = vpow.pop %v1064
      %v1066 = vmul.f32 %v999, 1.442695
      %v1067 = vpow.pop %v1066
      %v1068 = vmul.f32 %v1000, 1.442695
      %v1069 = vpow.pop %v1068
      %v1070 = vmul.f32 %v1001, 1.442695
      %v1071 = vpow.pop %v1070
      %v1072 = vmul.f32 %v1002, 1.442695
      %v1073 = vpow.pop %v1072
      %v1074 = vmul.f32 %v1003, 1.442695
      %v1075 = vpow.pop %v1074
      %v1076 = vmul.f32 %v1004, 1.442695
      %v1077 = vpow.pop %v1076
      %v1078 = vmul.f32 %v1005, 1.442695
      %v1079 = vpow.pop %v1078
      %v1080 = vmul.f32 %v1006, 1.442695
      %v1081 = vpow.pop %v1080
      %v1082 = vmul.f32 %v1007, 1.442695
      %v1083 = vpow.pop %v1082
      %v1084 = vmul.f32 %v1008, 1.442695
      %v1085 = vpow.pop %v1084
      %v1086 = vmul.f32 %v1009, 1.442695
      %v1087 = vpow.pop %v1086
      %v1088 = vmul.f32 %v1010, 1.442695
      %v1089 = vpow.pop %v1088
      %v1090 = vmul.f32 %v1011, 1.442695
      %v1091 = vpow.pop %v1090
      %v1092 = vmul.f32 %v1012, 1.442695
      %v1093 = vpow.pop %v1092
      %v1094 = vmul.f32 %v1013, 1.442695
      %v1095 = vpow.pop %v1094
      %v1096 = vmul.f32 %v1014, 1.442695
      %v1097 = vpow.pop %v1096
      %v1098 = vmul.f32 %v1015, 1.442695
      %v1099 = vpow.pop %v1098
      %v1100 = vmul.f32 %v1016, 1.442695
      %v1101 = vpow.pop %v1100
      %v1102 = vmul.f32 %v1017, 1.442695
      %v1103 = vpow.pop %v1102
      %v1104 = vmul.f32 %v1018, 1.442695
      %v1105 = vpow.pop %v1104
      %v1106 = vmul.f32 %v1019, 1.442695
      %v1107 = vpow.pop %v1106
      %v1108 = vmul.f32 %v1020, 1.442695
      %v1109 = vpow.pop %v1108
      %v1110 = vmul.f32 %v1021, 1.442695
      %v1111 = vpow.pop %v1110
      %v1112 = vmul.f32 %v1022, 1.442695
      %v1113 = vpow.pop %v1112
      %v1114 = vmul.f32 %v1023, 1.442695
      %v1115 = vpow.pop %v1114
      %v1116 = vmul.f32 %v1024, 1.442695
      %v1117 = vpow.pop %v1116
      %v1118 = vmul.f32 %v1025, 1.442695
      %v1119 = vpow.pop %v1118
      %v1120 = vmul.f32 %v1026, 1.442695
      %v1121 = vpow.pop %v1120
      %v1122 = vmul.f32 %v1027, 1.442695
      %v1123 = vpow.pop %v1122
      %v1124 = vmul.f32 %v1028, 1.442695
      %v1125 = vpow.pop %v1124
      %v1126 = vmul.f32 %v1029, 1.442695
      %v1127 = vpow.pop %v1126
      %v1128 = vmul.f32 %v1030, 1.442695
      %v1129 = vpow.pop %v1128
      %v1130 = vmul.f32 %v1031, 1.442695
      %v1131 = vpow.pop %v1130
      %v1132 = vmul.f32 %v1032, 1.442695
      %v1133 = vpow.pop %v1132
      %v1134 = vmul.f32 %v1033, 1.442695
      %v1135 = vpow.pop %v1134
      %v1136 = vmul.f32 %v1034, 1.442695
      %v1137 = vpow.pop %v1136
      %v1138 = vmul.f32 %v1035, 1.442695
      %v1139 = vpow.pop %v1138
      %v1140 = vmul.f32 %v1036, 1.442695
      %v1141 = vpow.pop %v1140
      %v1142 = vmul.f32 %v1037, 1.442695
      %v1143 = vpow.pop %v1142
      %v1144 = vmul.f32 %v1038, 1.442695
      %v1145 = vpow.pop %v1144
      %v1146 = vmul.f32 %v1039, 1.442695
      %v1147 = vpow.pop %v1146
      %v1148 = vmul.f32 %v1040, 1.442695
      %v1149 = vpow.pop %v1148
      %v1150 = vmul.f32 %v1041, 1.442695
      %v1151 = vpow.pop %v1150
      %v1152 = vmul.f32 %v1042, 1.442695
      %v1153 = vpow.pop %v1152
      %v1154 = vmul.f32 %v1043, 1.442695
      %v1155 = vpow.pop %v1154
      %v1156 = vmul.f32 %v1044, 1.442695
      %v1157 = vpow.pop %v1156
      %v1158 = vmul.f32 %v1045, 1.442695
      %v1159 = vpow.pop %v1158
      %v1160 = vmul.f32 %v1046, 1.442695
      %v1161 = vpow.pop %v1160
      %v1162 = vmul.f32 %v1047, 1.442695
      %v1163 = vpow.pop %v1162
      %v1164 = vmul.f32 %v1048, 1.442695
      %v1165 = vpow.pop %v1164
      %v1166 = vmul.f32 %v1049, 1.442695
      %v1167 = vpow.pop %v1166
      %v1168 = vmul.f32 %v1050, 1.442695
      %v1169 = vpow.pop %v1168
      %v1170 = vmul.f32 %v1051, 1.442695
      %v1171 = vpow.pop %v1170
      %v1172 = vmul.f32 %v1052, 1.442695
      %v1173 = vpow.pop %v1172
      %v1174 = vmul.f32 %v1053, 1.442695
      %v1175 = vpow.pop %v1174
      %v1176 = vmul.f32 %v1054, 1.442695
      %v1177 = vpow.pop %v1176
      %v1178 = vmul.f32 %v1055, 1.442695
      %v1179 = vpow.pop %v1178
      %v1180 = vmul.f32 %v1056, 1.442695
      %v1181 = vpow.pop %v1180
      %v1182 = vmul.f32 %v1057, 1.442695
      %v1183 = vpow.pop %v1182
      %v1184 = vadd.f32 %v1059, 1.0
      %v1185 = vadd.f32 %v1061, 1.0
      %v1186 = vadd.f32 %v1063, 1.0
      %v1187 = vadd.f32 %v1065, 1.0
      %v1188 = vadd.f32 %v1067, 1.0
      %v1189 = vadd.f32 %v1069, 1.0
      %v1190 = vadd.f32 %v1071, 1.0
      %v1191 = vadd.f32 %v1073, 1.0
      %v1192 = vadd.f32 %v1075, 1.0
      %v1193 = vadd.f32 %v1077, 1.0
      %v1194 = vadd.f32 %v1079, 1.0
      %v1195 = vadd.f32 %v1081, 1.0
      %v1196 = vadd.f32 %v1083, 1.0
      %v1197 = vadd.f32 %v1085, 1.0
      %v1198 = vadd.f32 %v1087, 1.0
      %v1199 = vadd.f32 %v1089, 1.0
      %v1200 = vadd.f32 %v1091, 1.0
      %v1201 = vadd.f32 %v1093, 1.0
      %v1202 = vadd.f32 %v1095, 1.0
      %v1203 = vadd.f32 %v1097, 1.0
      %v1204 = vadd.f32 %v1099, 1.0
      %v1205 = vadd.f32 %v1101, 1.0
      %v1206 = vadd.f32 %v1103, 1.0
      %v1207 = vadd.f32 %v1105, 1.0
      %v1208 = vadd.f32 %v1107, 1.0
      %v1209 = vadd.f32 %v1109, 1.0
      %v1210 = vadd.f32 %v1111, 1.0
      %v1211 = vadd.f32 %v1113, 1.0
      %v1212 = vadd.f32 %v1115, 1.0
      %v1213 = vadd.f32 %v1117, 1.0
      %v1214 = vadd.f32 %v1119, 1.0
      %v1215 = vadd.f32 %v1121, 1.0
      %v1216 = vadd.f32 %v1123, 1.0
      %v1217 = vadd.f32 %v1125, 1.0
      %v1218 = vadd.f32 %v1127, 1.0
      %v1219 = vadd.f32 %v1129, 1.0
      %v1220 = vadd.f32 %v1131, 1.0
      %v1221 = vadd.f32 %v1133, 1.0
      %v1222 = vadd.f32 %v1135, 1.0
      %v1223 = vadd.f32 %v1137, 1.0
      %v1224 = vadd.f32 %v1139, 1.0
      %v1225 = vadd.f32 %v1141, 1.0
      %v1226 = vadd.f32 %v1143, 1.0
      %v1227 = vadd.f32 %v1145, 1.0
      %v1228 = vadd.f32 %v1147, 1.0
      %v1229 = vadd.f32 %v1149, 1.0
      %v1230 = vadd.f32 %v1151, 1.0
      %v1231 = vadd.f32 %v1153, 1.0
      %v1232 = vadd.f32 %v1155, 1.0
      %v1233 = vadd.f32 %v1157, 1.0
      %v1234 = vadd.f32 %v1159, 1.0
      %v1235 = vadd.f32 %v1161, 1.0
      %v1236 = vadd.f32 %v1163, 1.0
      %v1237 = vadd.f32 %v1165, 1.0
      %v1238 = vadd.f32 %v1167, 1.0
      %v1239 = vadd.f32 %v1169, 1.0
      %v1240 = vadd.f32 %v1171, 1.0
      %v1241 = vadd.f32 %v1173, 1.0
      %v1242 = vadd.f32 %v1175, 1.0
      %v1243 = vadd.f32 %v1177, 1.0
      %v1244 = vadd.f32 %v1179, 1.0
      %v1245 = vadd.f32 %v1181, 1.0
      %v1246 = vadd.f32 %v1183, 1.0
      %v1247 = vrcp.pop %v1184
      %v1248 = vmul.f32 1.0, %v1247
      %v1249 = vrcp.pop %v1185
      %v1250 = vmul.f32 1.0, %v1249
      %v1251 = vrcp.pop %v1186
      %v1252 = vmul.f32 1.0, %v1251
      %v1253 = vrcp.pop %v1187
      %v1254 = vmul.f32 1.0, %v1253
      %v1255 = vrcp.pop %v1188
      %v1256 = vmul.f32 1.0, %v1255
      %v1257 = vrcp.pop %v1189
      %v1258 = vmul.f32 1.0, %v1257
      %v1259 = vrcp.pop %v1190
      %v1260 = vmul.f32 1.0, %v1259
      %v1261 = vrcp.pop %v1191
      %v1262 = vmul.f32 1.0, %v1261
      %v1263 = vrcp.pop %v1192
      %v1264 = vmul.f32 1.0, %v1263
      %v1265 = vrcp.pop %v1193
      %v1266 = vmul.f32 1.0, %v1265
      %v1267 = vrcp.pop %v1194
      %v1268 = vmul.f32 1.0, %v1267
      %v1269 = vrcp.pop %v1195
      %v1270 = vmul.f32 1.0, %v1269
      %v1271 = vrcp.pop %v1196
      %v1272 = vmul.f32 1.0, %v1271
      %v1273 = vrcp.pop %v1197
      %v1274 = vmul.f32 1.0, %v1273
      %v1275 = vrcp.pop %v1198
      %v1276 = vmul.f32 1.0, %v1275
      %v1277 = vrcp.pop %v1199
      %v1278 = vmul.f32 1.0, %v1277
      %v1279 = vrcp.pop %v1200
      %v1280 = vmul.f32 1.0, %v1279
      %v1281 = vrcp.pop %v1201
      %v1282 = vmul.f32 1.0, %v1281
      %v1283 = vrcp.pop %v1202
      %v1284 = vmul.f32 1.0, %v1283
      %v1285 = vrcp.pop %v1203
      %v1286 = vmul.f32 1.0, %v1285
      %v1287 = vrcp.pop %v1204
      %v1288 = vmul.f32 1.0, %v1287
      %v1289 = vrcp.pop %v1205
      %v1290 = vmul.f32 1.0, %v1289
      %v1291 = vrcp.pop %v1206
      %v1292 = vmul.f32 1.0, %v1291
      %v1293 = vrcp.pop %v1207
      %v1294 = vmul.f32 1.0, %v1293
      %v1295 = vrcp.pop %v1208
      %v1296 = vmul.f32 1.0, %v1295
      %v1297 = vrcp.pop %v1209
      %v1298 = vmul.f32 1.0, %v1297
      %v1299 = vrcp.pop %v1210
      %v1300 = vmul.f32 1.0, %v1299
      %v1301 = vrcp.pop %v1211
      %v1302 = vmul.f32 1.0, %v1301
      %v1303 = vrcp.pop %v1212
      %v1304 = vmul.f32 1.0, %v1303
      %v1305 = vrcp.pop %v1213
      %v1306 = vmul.f32 1.0, %v1305
      %v1307 = vrcp.pop %v1214
      %v1308 = vmul.f32 1.0, %v1307
      %v1309 = vrcp.pop %v1215
      %v1310 = vmul.f32 1.0, %v1309
      %v1311 = vrcp.pop %v1216
      %v1312 = vmul.f32 1.0, %v1311
      %v1313 = vrcp.pop %v1217
      %v1314 = vmul.f32 1.0, %v1313
      %v1315 = vrcp.pop %v1218
      %v1316 = vmul.f32 1.0, %v1315
      %v1317 = vrcp.pop %v1219
      %v1318 = vmul.f32 1.0, %v1317
      %v1319 = vrcp.pop %v1220
      %v1320 = vmul.f32 1.0, %v1319
      %v1321 = vrcp.pop %v1221
      %v1322 = vmul.f32 1.0, %v1321
      %v1323 = vrcp.pop %v1222
      %v1324 = vmul.f32 1.0, %v1323
      %v1325 = vrcp.pop %v1223
      %v1326 = vmul.f32 1.0, %v1325
      %v1327 = vrcp.pop %v1224
      %v1328 = vmul.f32 1.0, %v1327
      %v1329 = vrcp.pop %v1225
      %v1330 = vmul.f32 1.0, %v1329
      %v1331 = vrcp.pop %v1226
      %v1332 = vmul.f32 1.0, %v1331
      %v1333 = vrcp.pop %v1227
      %v1334 = vmul.f32 1.0, %v1333
      %v1335 = vrcp.pop %v1228
      %v1336 = vmul.f32 1.0, %v1335
      %v1337 = vrcp.pop %v1229
      %v1338 = vmul.f32 1.0, %v1337
      %v1339 = vrcp.pop %v1230
      %v1340 = vmul.f32 1.0, %v1339
      %v1341 = vrcp.pop %v1231
      %v1342 = vmul.f32 1.0, %v1341
      %v1343 = vrcp.pop %v1232
      %v1344 = vmul.f32 1.0, %v1343
      %v1345 = vrcp.pop %v1233
      %v1346 = vmul.f32 1.0, %v1345
      %v1347 = vrcp.pop %v1234
      %v1348 = vmul.f32 1.0, %v1347
      %v1349 = vrcp.pop %v1235
      %v1350 = vmul.f32 1.0, %v1349
      %v1351 = vrcp.pop %v1236
      %v1352 = vmul.f32 1.0, %v1351
      %v1353 = vrcp.pop %v1237
      %v1354 = vmul.f32 1.0, %v1353
      %v1355 = vrcp.pop %v1238
      %v1356 = vmul.f32 1.0, %v1355
      %v1357 = vrcp.pop %v1239
      %v1358 = vmul.f32 1.0, %v1357
      %v1359 = vrcp.pop %v1240
      %v1360 = vmul.f32 1.0, %v1359
      %v1361 = vrcp.pop %v1241
      %v1362 = vmul.f32 1.0, %v1361
      %v1363 = vrcp.pop %v1242
      %v1364 = vmul.f32 1.0, %v1363
      %v1365 = vrcp.pop %v1243
      %v1366 = vmul.f32 1.0, %v1365
      %v1367 = vrcp.pop %v1244
      %v1368 = vmul.f32 1.0, %v1367
      %v1369 = vrcp.pop %v1245
      %v1370 = vmul.f32 1.0, %v1369
      %v1371 = vrcp.pop %v1246
      %v1372 = vmul.f32 1.0, %v1371
      %v1373 = vmul.f32 %v682, %v1248
      %v1374 = vmul.f32 %v687, %v1250
      %v1375 = vmul.f32 %v692, %v1252
      %v1376 = vmul.f32 %v697, %v1254
      %v1377 = vmul.f32 %v702, %v1256
      %v1378 = vmul.f32 %v707, %v1258
      %v1379 = vmul.f32 %v712, %v1260
      %v1380 = vmul.f32 %v717, %v1262
      %v1381 = vmul.f32 %v722, %v1264
      %v1382 = vmul.f32 %v727, %v1266
      %v1383 = vmul.f32 %v732, %v1268
      %v1384 = vmul.f32 %v737, %v1270
      %v1385 = vmul.f32 %v742, %v1272
      %v1386 = vmul.f32 %v747, %v1274
      %v1387 = vmul.f32 %v752, %v1276
      %v1388 = vmul.f32 %v757, %v1278
      %v1389 = vmul.f32 %v762, %v1280
      %v1390 = vmul.f32 %v767, %v1282
      %v1391 = vmul.f32 %v772, %v1284
      %v1392 = vmul.f32 %v777, %v1286
      %v1393 = vmul.f32 %v782, %v1288
      %v1394 = vmul.f32 %v787, %v1290
      %v1395 = vmul.f32 %v792, %v1292
      %v1396 = vmul.f32 %v797, %v1294
      %v1397 = vmul.f32 %v802, %v1296
      %v1398 = vmul.f32 %v807, %v1298
      %v1399 = vmul.f32 %v812, %v1300
      %v1400 = vmul.f32 %v817, %v1302
      %v1401 = vmul.f32 %v822, %v1304
      %v1402 = vmul.f32 %v827, %v1306
      %v1403 = vmul.f32 %v832, %v1308
      %v1404 = vmul.f32 %v837, %v1310
      %v1405 = vmul.f32 %v842, %v1312
      %v1406 = vmul.f32 %v847, %v1314
      %v1407 = vmul.f32 %v852, %v1316
      %v1408 = vmul.f32 %v857, %v1318
      %v1409 = vmul.f32 %v862, %v1320
      %v1410 = vmul.f32 %v867, %v1322
      %v1411 = vmul.f32 %v872, %v1324
      %v1412 = vmul.f32 %v877, %v1326
      %v1413 = vmul.f32 %v882, %v1328
      %v1414 = vmul.f32 %v887, %v1330
      %v1415 = vmul.f32 %v892, %v1332
      %v1416 = vmul.f32 %v897, %v1334
      %v1417 = vmul.f32 %v902, %v1336
      %v1418 = vmul.f32 %v907, %v1338
      %v1419 = vmul.f32 %v912, %v1340
      %v1420 = vmul.f32 %v917, %v1342
      %v1421 = vmul.f32 %v922, %v1344
      %v1422 = vmul.f32 %v927, %v1346
      %v1423 = vmul.f32 %v932, %v1348
      %v1424 = vmul.f32 %v937, %v1350
      %v1425 = vmul.f32 %v942, %v1352
      %v1426 = vmul.f32 %v947, %v1354
      %v1427 = vmul.f32 %v952, %v1356
      %v1428 = vmul.f32 %v957, %v1358
      %v1429 = vmul.f32 %v962, %v1360
      %v1430 = vmul.f32 %v967, %v1362
      %v1431 = vmul.f32 %v972, %v1364
      %v1432 = vmul.f32 %v977, %v1366
      %v1433 = vmul.f32 %v982, %v1368
      %v1434 = vmul.f32 %v987, %v1370
      %v1435 = vmul.f32 %v992, %v1372
      %v1436 = vld [vmem:[%s4] sm:$0x1]
      %v1437 = vld [vmem:[#allocation2] sm:$0x1]
      %1439 = vset.pattern.permute.xlu0 0
      %1440 = vperm.xlu0 %1439, %v1437
      %v1441 = vpop.permute.xlu0 %1440
      %v1443 = vlaneseq
      %v1444 = vshrl.u32 %v1443, 7
      %v1445 = vsub.s32 0, %v1444
      %v1446 = vrot.slane %v1441, %v1445
      %vm1447 = vcmask 261120
      %v1449 = vsel %vm1447, %v1436, 0
      %v1452 = vsel %vm1447, %v1373, 0
      %v1455 = vsel %vm1447, %v1374, 0
      %v1458 = vsel %vm1447, %v1375, 0
      %v1461 = vsel %vm1447, %v1376, 0
      %v1464 = vsel %vm1447, %v1377, 0
      %v1467 = vsel %vm1447, %v1378, 0
      %v1470 = vsel %vm1447, %v1379, 0
      %v1473 = vsel %vm1447, %v1380, 0
      %v1476 = vsel %vm1447, %v1381, 0
      %v1479 = vsel %vm1447, %v1382, 0
      %v1482 = vsel %vm1447, %v1383, 0
      %v1485 = vsel %vm1447, %v1384, 0
      %v1488 = vsel %vm1447, %v1385, 0
      %v1491 = vsel %vm1447, %v1386, 0
      %v1494 = vsel %vm1447, %v1387, 0
      %v1497 = vsel %vm1447, %v1388, 0
      %v1500 = vsel %vm1447, %v1389, 0
      %v1503 = vsel %vm1447, %v1390, 0
      %v1506 = vsel %vm1447, %v1391, 0
      %v1509 = vsel %vm1447, %v1392, 0
      %v1512 = vsel %vm1447, %v1393, 0
      %v1515 = vsel %vm1447, %v1394, 0
      %v1518 = vsel %vm1447, %v1395, 0
      %v1521 = vsel %vm1447, %v1396, 0
      %v1524 = vsel %vm1447, %v1397, 0
      %v1527 = vsel %vm1447, %v1398, 0
      %v1530 = vsel %vm1447, %v1399, 0
      %v1533 = vsel %vm1447, %v1400, 0
      %v1536 = vsel %vm1447, %v1401, 0
      %v1539 = vsel %vm1447, %v1402, 0
      %v1542 = vsel %vm1447, %v1403, 0
      %v1545 = vsel %vm1447, %v1404, 0
      %v1548 = vsel %vm1447, %v1405, 0
      %v1551 = vsel %vm1447, %v1406, 0
      %v1554 = vsel %vm1447, %v1407, 0
      %v1557 = vsel %vm1447, %v1408, 0
      %v1560 = vsel %vm1447, %v1409, 0
      %v1563 = vsel %vm1447, %v1410, 0
      %v1566 = vsel %vm1447, %v1411, 0
      %v1569 = vsel %vm1447, %v1412, 0
      %v1572 = vsel %vm1447, %v1413, 0
      %v1575 = vsel %vm1447, %v1414, 0
      %v1578 = vsel %vm1447, %v1415, 0
      %v1581 = vsel %vm1447, %v1416, 0
      %v1584 = vsel %vm1447, %v1417, 0
      %v1587 = vsel %vm1447, %v1418, 0
      %v1590 = vsel %vm1447, %v1419, 0
      %v1593 = vsel %vm1447, %v1420, 0
      %v1596 = vsel %vm1447, %v1421, 0
      %v1599 = vsel %vm1447, %v1422, 0
      %v1602 = vsel %vm1447, %v1423, 0
      %v1605 = vsel %vm1447, %v1424, 0
      %v1608 = vsel %vm1447, %v1425, 0
      %v1611 = vsel %vm1447, %v1426, 0
      %v1614 = vsel %vm1447, %v1427, 0
      %v1617 = vsel %vm1447, %v1428, 0
      %v1620 = vsel %vm1447, %v1429, 0
      %v1623 = vsel %vm1447, %v1430, 0
      %v1626 = vsel %vm1447, %v1431, 0
      %v1629 = vsel %vm1447, %v1432, 0
      %v1632 = vsel %vm1447, %v1433, 0
      %v1635 = vsel %vm1447, %v1434, 0
      %v1638 = vsel %vm1447, %v1435, 0
      %1640 = vmatprep.subr.mxu0 0.0
      %1641 = vmatpush1.xpose.msra.mxu0 %v1452
      %1642 = vmatprep.subr.mxu0 0.0
      %1643 = vmatpush1.xpose.msra.mxu0 %v1455
      %1644 = vmatprep.subr.mxu0 0.0
      %1645 = vmatpush1.xpose.msra.mxu0 %v1458
      %1646 = vmatprep.subr.mxu0 0.0
      %1647 = vmatpush1.xpose.msra.mxu0 %v1461
      %1648 = vmatprep.subr.mxu0 0.0
      %1649 = vmatpush1.xpose.msra.mxu0 %v1464
      %1650 = vmatprep.subr.mxu0 0.0
      %1651 = vmatpush1.xpose.msra.mxu0 %v1467
      %1652 = vmatprep.subr.mxu0 0.0
      %1653 = vmatpush1.xpose.msra.mxu0 %v1470
      %1654 = vmatprep.subr.mxu0 0.0
      %1655 = vmatpush1.xpose.msra.mxu0 %v1473
      %1656 = vmatprep.subr.mxu0 0.0
      %1657 = vmatpush1.xpose.msra.mxu0 %v1476
      %1658 = vmatprep.subr.mxu0 0.0
      %1659 = vmatpush1.xpose.msra.mxu0 %v1479
      %1660 = vmatprep.subr.mxu0 0.0
      %1661 = vmatpush1.xpose.msra.mxu0 %v1482
      %1662 = vmatprep.subr.mxu0 0.0
      %1663 = vmatpush1.xpose.msra.mxu0 %v1485
      %1664 = vmatprep.subr.mxu0 0.0
      %1665 = vmatpush1.xpose.msra.mxu0 %v1488
      %1666 = vmatprep.subr.mxu0 0.0
      %1667 = vmatpush1.xpose.msra.mxu0 %v1491
      %1668 = vmatprep.subr.mxu0 0.0
      %1669 = vmatpush1.xpose.msra.mxu0 %v1494
      %1670 = vmatprep.subr.mxu0 0.0
      %1671 = vmatpush1.xpose.msra.mxu0 %v1497
      %1672 = vmatprep.subr.mxu0 0.0
      %1673 = vmatpush1.xpose.msra.mxu0 %v1500
      %1674 = vmatprep.subr.mxu0 0.0
      %1675 = vmatpush1.xpose.msra.mxu0 %v1503
      %1676 = vmatprep.subr.mxu0 0.0
      %1677 = vmatpush1.xpose.msra.mxu0 %v1506
      %1678 = vmatprep.subr.mxu0 0.0
      %1679 = vmatpush1.xpose.msra.mxu0 %v1509
      %1680 = vmatprep.subr.mxu0 0.0
      %1681 = vmatpush1.xpose.msra.mxu0 %v1512
      %1682 = vmatprep.subr.mxu0 0.0
      %1683 = vmatpush1.xpose.msra.mxu0 %v1515
      %1684 = vmatprep.subr.mxu0 0.0
      %1685 = vmatpush1.xpose.msra.mxu0 %v1518
      %1686 = vmatprep.subr.mxu0 0.0
      %1687 = vmatpush1.xpose.msra.mxu0 %v1521
      %1688 = vmatprep.subr.mxu0 0.0
      %1689 = vmatpush1.xpose.msra.mxu0 %v1524
      %1690 = vmatprep.subr.mxu0 0.0
      %1691 = vmatpush1.xpose.msra.mxu0 %v1527
      %1692 = vmatprep.subr.mxu0 0.0
      %1693 = vmatpush1.xpose.msra.mxu0 %v1530
      %1694 = vmatprep.subr.mxu0 0.0
      %1695 = vmatpush1.xpose.msra.mxu0 %v1533
      %1696 = vmatprep.subr.mxu0 0.0
      %1697 = vmatpush1.xpose.msra.mxu0 %v1536
      %1698 = vmatprep.subr.mxu0 0.0
      %1699 = vmatpush1.xpose.msra.mxu0 %v1539
      %1700 = vmatprep.subr.mxu0 0.0
      %1701 = vmatpush1.xpose.msra.mxu0 %v1542
      %1702 = vmatprep.subr.mxu0 0.0
      %1703 = vmatpush1.xpose.msra.mxu0 %v1545
      %1704 = vmatprep.mubr.f32.mxu0 0.0
      %1705 = vmatmul.mubr.f32.gmra.mrb[0].mxu0 %v1449
      %v1706 = vpop.f32.mrb[0].mxu0
      %v1707 = vadd.f32 %v1446, %v1706
      %v1708 = vpop.f32.mrb[0].mxu0
      %v1709 = vadd.f32 %v1446, %v1708
      %1710 = vdwg.mxu0
      %1711 = vmatprep.subr.mxu0 0.0
      %1712 = vmatpush1.xpose.msra.mxu0 %v1548
      %1713 = vmatprep.subr.mxu0 0.0
      %1714 = vmatpush1.xpose.msra.mxu0 %v1551
      %1715 = vmatprep.subr.mxu0 0.0
      %1716 = vmatpush1.xpose.msra.mxu0 %v1554
      %1717 = vmatprep.subr.mxu0 0.0
      %1718 = vmatpush1.xpose.msra.mxu0 %v1557
      %1719 = vmatprep.subr.mxu0 0.0
      %1720 = vmatpush1.xpose.msra.mxu0 %v1560
      %1721 = vmatprep.subr.mxu0 0.0
      %1722 = vmatpush1.xpose.msra.mxu0 %v1563
      %1723 = vmatprep.subr.mxu0 0.0
      %1724 = vmatpush1.xpose.msra.mxu0 %v1566
      %1725 = vmatprep.subr.mxu0 0.0
      %1726 = vmatpush1.xpose.msra.mxu0 %v1569
      %1727 = vmatprep.subr.mxu0 0.0
      %1728 = vmatpush1.xpose.msra.mxu0 %v1572
      %1729 = vmatprep.subr.mxu0 0.0
      %1730 = vmatpush1.xpose.msra.mxu0 %v1575
      %1731 = vmatprep.subr.mxu0 0.0
      %1732 = vmatpush1.xpose.msra.mxu0 %v1578
      %1733 = vmatprep.subr.mxu0 0.0
      %1734 = vmatpush1.xpose.msra.mxu0 %v1581
      %1735 = vmatprep.subr.mxu0 0.0
      %1736 = vmatpush1.xpose.msra.mxu0 %v1584
      %1737 = vmatprep.subr.mxu0 0.0
      %1738 = vmatpush1.xpose.msra.mxu0 %v1587
      %1739 = vmatprep.subr.mxu0 0.0
      %1740 = vmatpush1.xpose.msra.mxu0 %v1590
      %1741 = vmatprep.subr.mxu0 0.0
      %1742 = vmatpush1.xpose.msra.mxu0 %v1593
      %1743 = vmatprep.subr.mxu0 0.0
      %1744 = vmatpush1.xpose.msra.mxu0 %v1596
      %1745 = vmatprep.subr.mxu0 0.0
      %1746 = vmatpush1.xpose.msra.mxu0 %v1599
      %1747 = vmatprep.subr.mxu0 0.0
      %1748 = vmatpush1.xpose.msra.mxu0 %v1602
      %1749 = vmatprep.subr.mxu0 0.0
      %1750 = vmatpush1.xpose.msra.mxu0 %v1605
      %1751 = vmatprep.subr.mxu0 0.0
      %1752 = vmatpush1.xpose.msra.mxu0 %v1608
      %1753 = vmatprep.subr.mxu0 0.0
      %1754 = vmatpush1.xpose.msra.mxu0 %v1611
      %1755 = vmatprep.subr.mxu0 0.0
      %1756 = vmatpush1.xpose.msra.mxu0 %v1614
      %1757 = vmatprep.subr.mxu0 0.0
      %1758 = vmatpush1.xpose.msra.mxu0 %v1617
      %1759 = vmatprep.subr.mxu0 0.0
      %1760 = vmatpush1.xpose.msra.mxu0 %v1620
      %1761 = vmatprep.subr.mxu0 0.0
      %1762 = vmatpush1.xpose.msra.mxu0 %v1623
      %1763 = vmatprep.subr.mxu0 0.0
      %1764 = vmatpush1.xpose.msra.mxu0 %v1626
      %1765 = vmatprep.subr.mxu0 0.0
      %1766 = vmatpush1.xpose.msra.mxu0 %v1629
      %1767 = vmatprep.subr.mxu0 0.0
      %1768 = vmatpush1.xpose.msra.mxu0 %v1632
      %1769 = vmatprep.subr.mxu0 0.0
      %1770 = vmatpush1.xpose.msra.mxu0 %v1635
      %1771 = vmatprep.subr.mxu0 0.0
      %1772 = vmatpush1.xpose.msra.mxu0 %v1638
      %1773 = vmatprep.subr.mxu0 0.0
      %1774 = vmatpush1.xpose.msra.mxu0 0.0
      %1775 = vmatprep.mubr.f32.mxu0 0.0
      %1776 = vmatmul.mubr.f32.gmra.mrb[0].mxu0 %v1449
      %v1777 = vpop.f32.mrb[0].mxu0
      %v1778 = vadd.f32 %v1446, %v1777
      %v1779 = vpop.f32.mrb[0].mxu0
      %v1780 = vadd.f32 %v1446, %v1779
      %1781 = vdwg.mxu0
      %v1782 = vld [vmem:[%s6] sm:$0x1]
      %v1783 = vld [vmem:[#allocation3] sm:$0x1]
      %1785 = vset.pattern.permute.xlu0 0
      %1786 = vperm.xlu0 %1785, %v1783
      %v1787 = vpop.permute.xlu0 %1786
      %v1789 = vlaneseq
      %v1790 = vshrl.u32 %v1789, 7
      %v1791 = vsub.s32 0, %v1790
      %v1792 = vrot.slane %v1787, %v1791
      %v1794 = vsel %vm425, %v1782, 0
      %1796 = vmatprep.subr.mxu0 0.0
      %1797 = vmatpush1.xpose.msra.mxu0 %v427
      %1798 = vmatprep.subr.mxu0 0.0
      %1799 = vmatpush1.xpose.msra.mxu0 %v430
      %1800 = vmatprep.subr.mxu0 0.0
      %1801 = vmatpush1.xpose.msra.mxu0 %v433
      %1802 = vmatprep.subr.mxu0 0.0
      %1803 = vmatpush1.xpose.msra.mxu0 %v436
      %1804 = vmatprep.subr.mxu0 0.0
      %1805 = vmatpush1.xpose.msra.mxu0 %v439
      %1806 = vmatprep.subr.mxu0 0.0
      %1807 = vmatpush1.xpose.msra.mxu0 %v442
      %1808 = vmatprep.subr.mxu0 0.0
      %1809 = vmatpush1.xpose.msra.mxu0 %v445
      %1810 = vmatprep.subr.mxu0 0.0
      %1811 = vmatpush1.xpose.msra.mxu0 %v448
      %1812 = vmatprep.subr.mxu0 0.0
      %1813 = vmatpush1.xpose.msra.mxu0 %v451
      %1814 = vmatprep.subr.mxu0 0.0
      %1815 = vmatpush1.xpose.msra.mxu0 %v454
      %1816 = vmatprep.subr.mxu0 0.0
      %1817 = vmatpush1.xpose.msra.mxu0 %v457
      %1818 = vmatprep.subr.mxu0 0.0
      %1819 = vmatpush1.xpose.msra.mxu0 %v460
      %1820 = vmatprep.subr.mxu0 0.0
      %1821 = vmatpush1.xpose.msra.mxu0 %v463
      %1822 = vmatprep.subr.mxu0 0.0
      %1823 = vmatpush1.xpose.msra.mxu0 %v466
      %1824 = vmatprep.subr.mxu0 0.0
      %1825 = vmatpush1.xpose.msra.mxu0 %v469
      %1826 = vmatprep.subr.mxu0 0.0
      %1827 = vmatpush1.xpose.msra.mxu0 %v472
      %1828 = vmatprep.subr.mxu0 0.0
      %1829 = vmatpush1.xpose.msra.mxu0 %v475
      %1830 = vmatprep.subr.mxu0 0.0
      %1831 = vmatpush1.xpose.msra.mxu0 %v478
      %1832 = vmatprep.subr.mxu0 0.0
      %1833 = vmatpush1.xpose.msra.mxu0 %v481
      %1834 = vmatprep.subr.mxu0 0.0
      %1835 = vmatpush1.xpose.msra.mxu0 %v484
      %1836 = vmatprep.subr.mxu0 0.0
      %1837 = vmatpush1.xpose.msra.mxu0 %v487
      %1838 = vmatprep.subr.mxu0 0.0
      %1839 = vmatpush1.xpose.msra.mxu0 %v490
      %1840 = vmatprep.subr.mxu0 0.0
      %1841 = vmatpush1.xpose.msra.mxu0 %v493
      %1842 = vmatprep.subr.mxu0 0.0
      %1843 = vmatpush1.xpose.msra.mxu0 %v496
      %1844 = vmatprep.subr.mxu0 0.0
      %1845 = vmatpush1.xpose.msra.mxu0 %v499
      %1846 = vmatprep.subr.mxu0 0.0
      %1847 = vmatpush1.xpose.msra.mxu0 %v502
      %1848 = vmatprep.subr.mxu0 0.0
      %1849 = vmatpush1.xpose.msra.mxu0 %v505
      %1850 = vmatprep.subr.mxu0 0.0
      %1851 = vmatpush1.xpose.msra.mxu0 %v508
      %1852 = vmatprep.subr.mxu0 0.0
      %1853 = vmatpush1.xpose.msra.mxu0 %v511
      %1854 = vmatprep.subr.mxu0 0.0
      %1855 = vmatpush1.xpose.msra.mxu0 %v514
      %1856 = vmatprep.subr.mxu0 0.0
      %1857 = vmatpush1.xpose.msra.mxu0 %v517
      %1858 = vmatprep.subr.mxu0 0.0
      %1859 = vmatpush1.xpose.msra.mxu0 %v520
      %1860 = vmatprep.mubr.f32.mxu0 0.0
      %1861 = vmatmul.mubr.f32.gmra.mrb[0].mxu0 %v1794
      %v1862 = vpop.f32.mrb[0].mxu0
      %v1863 = vadd.f32 %v1792, %v1862
      %v1864 = vpop.f32.mrb[0].mxu0
      %v1865 = vadd.f32 %v1792, %v1864
      %1866 = vdwg.mxu0
      %1867 = vmatprep.subr.mxu0 0.0
      %1868 = vmatpush1.xpose.msra.mxu0 %v523
      %1869 = vmatprep.subr.mxu0 0.0
      %1870 = vmatpush1.xpose.msra.mxu0 %v526
      %1871 = vmatprep.subr.mxu0 0.0
      %1872 = vmatpush1.xpose.msra.mxu0 %v529
      %1873 = vmatprep.subr.mxu0 0.0
      %1874 = vmatpush1.xpose.msra.mxu0 %v532
      %1875 = vmatprep.subr.mxu0 0.0
      %1876 = vmatpush1.xpose.msra.mxu0 %v535
      %1877 = vmatprep.subr.mxu0 0.0
      %1878 = vmatpush1.xpose.msra.mxu0 %v538
      %1879 = vmatprep.subr.mxu0 0.0
      %1880 = vmatpush1.xpose.msra.mxu0 %v541
      %1881 = vmatprep.subr.mxu0 0.0
      %1882 = vmatpush1.xpose.msra.mxu0 %v544
      %1883 = vmatprep.subr.mxu0 0.0
      %1884 = vmatpush1.xpose.msra.mxu0 %v547
      %1885 = vmatprep.subr.mxu0 0.0
      %1886 = vmatpush1.xpose.msra.mxu0 %v550
      %1887 = vmatprep.subr.mxu0 0.0
      %1888 = vmatpush1.xpose.msra.mxu0 %v553
      %1889 = vmatprep.subr.mxu0 0.0
      %1890 = vmatpush1.xpose.msra.mxu0 %v556
      %1891 = vmatprep.subr.mxu0 0.0
      %1892 = vmatpush1.xpose.msra.mxu0 %v559
      %1893 = vmatprep.subr.mxu0 0.0
      %1894 = vmatpush1.xpose.msra.mxu0 %v562
      %1895 = vmatprep.subr.mxu0 0.0
      %1896 = vmatpush1.xpose.msra.mxu0 %v565
      %1897 = vmatprep.subr.mxu0 0.0
      %1898 = vmatpush1.xpose.msra.mxu0 %v568
      %1899 = vmatprep.subr.mxu0 0.0
      %1900 = vmatpush1.xpose.msra.mxu0 %v571
      %1901 = vmatprep.subr.mxu0 0.0
      %1902 = vmatpush1.xpose.msra.mxu0 %v574
      %1903 = vmatprep.subr.mxu0 0.0
      %1904 = vmatpush1.xpose.msra.mxu0 %v577
      %1905 = vmatprep.subr.mxu0 0.0
      %1906 = vmatpush1.xpose.msra.mxu0 %v580
      %1907 = vmatprep.subr.mxu0 0.0
      %1908 = vmatpush1.xpose.msra.mxu0 %v583
      %1909 = vmatprep.subr.mxu0 0.0
      %1910 = vmatpush1.xpose.msra.mxu0 %v586
      %1911 = vmatprep.subr.mxu0 0.0
      %1912 = vmatpush1.xpose.msra.mxu0 %v589
      %1913 = vmatprep.subr.mxu0 0.0
      %1914 = vmatpush1.xpose.msra.mxu0 %v592
      %1915 = vmatprep.subr.mxu0 0.0
      %1916 = vmatpush1.xpose.msra.mxu0 %v595
      %1917 = vmatprep.subr.mxu0 0.0
      %1918 = vmatpush1.xpose.msra.mxu0 %v598
      %1919 = vmatprep.subr.mxu0 0.0
      %1920 = vmatpush1.xpose.msra.mxu0 %v601
      %1921 = vmatprep.subr.mxu0 0.0
      %1922 = vmatpush1.xpose.msra.mxu0 %v604
      %1923 = vmatprep.subr.mxu0 0.0
      %1924 = vmatpush1.xpose.msra.mxu0 %v607
      %1925 = vmatprep.subr.mxu0 0.0
      %1926 = vmatpush1.xpose.msra.mxu0 %v610
      %1927 = vmatprep.subr.mxu0 0.0
      %1928 = vmatpush1.xpose.msra.mxu0 %v613
      %1929 = vmatprep.subr.mxu0 0.0
      %1930 = vmatpush1.xpose.msra.mxu0 0.0
      %1931 = vmatprep.mubr.f32.mxu0 0.0
      %1932 = vmatmul.mubr.f32.gmra.mrb[0].mxu0 %v1794
      %v1933 = vpop.f32.mrb[0].mxu0
      %v1934 = vadd.f32 %v1792, %v1933
      %v1935 = vpop.f32.mrb[0].mxu0
      %v1936 = vadd.f32 %v1792, %v1935
      %1937 = vdwg.mxu0
      %v1938 = vmul.f32 %v1707, %v1863
      %v1939 = vmul.f32 %v1709, %v1865
      %v1940 = vmul.f32 %v1778, %v1934
      %v1941 = vmul.f32 %v1780, %v1936
      %v1942 = vlaneseq
      %v1943 = vand.u32 %v1942, 127
      %v1944 = vadd.s32 %v1943, 128
      %v1945 = vadd.s32 %v1943, 256
      %v1946 = vadd.s32 %v1943, 384
      %s1947 = smul.u32 %s23, 504
      %v1948 = vstv %s1947
      %v1949 = vadd.s32 %v1943, %v1948
      %v1950 = vadd.s32 %v1944, %v1948
      %v1951 = vadd.s32 %v1945, %v1948
      %v1952 = vadd.s32 %v1946, %v1948
      %vm1953 = vcmp.lt.s32.totalorder %v1949, 1000
      %vm1954 = vcmp.lt.s32.totalorder %v1950, 1000
      %vm1955 = vcmp.lt.s32.totalorder %v1951, 1000
      %vm1956 = vcmp.lt.s32.totalorder %v1952, 1000
      %v1957 = vsel %vm1953, %v1938, 0.0
      %v1958 = vsel %vm1954, %v1939, 0.0
      %v1959 = vsel %vm1955, %v1940, 0.0
      %v1960 = vsel %vm1956, %v1941, 0.0
      %v1961 = vlaneseq
      %v1962 = vshrl.u32 %v1961, 7
      %v1963 = vld [vmem:[%s342] sm:$0xf]
      %v1964 = vlaneseq
      %v1965 = vshrl.u32 %v1964, 7
      %v1966 = vsub.s32 0, %v1965
      %v1967 = vrot.slane %v1963, %v1966
      %v1968 = vlaneseq
      %v1969 = vshrl.u32 %v1968, 7
      %v1970 = vsub.s32 1, %v1969
      %v1971 = vrot.slane %v1963, %v1970
      %v1972 = vlaneseq
      %v1973 = vshrl.u32 %v1972, 7
      %v1974 = vsub.s32 2, %v1973
      %v1975 = vrot.slane %v1963, %v1974
      %v1976 = vlaneseq
      %v1977 = vshrl.u32 %v1976, 7
      %v1978 = vsub.s32 3, %v1977
      %v1979 = vrot.slane %v1963, %v1978
      %vm1980 = vcmp.eq.s32.totalorder %v1967, %v1962
      %vm1981 = vcmp.eq.s32.totalorder %v1971, %v1962
      %vm1982 = vcmp.eq.s32.totalorder %v1975, %v1962
      %vm1983 = vcmp.eq.s32.totalorder %v1979, %v1962
      %v1984 = vlaneseq
      %v1985 = vshrl.u32 %v1984, 7
      %v1986 = vsub.s32 0, %v1985
      %v1987 = vrot.slane %v1957, %v1986
      %v1988 = vlaneseq
      %v1989 = vshrl.u32 %v1988, 7
      %v1990 = vsub.s32 0, %v1989
      %v1991 = vrot.slane %v1958, %v1990
      %v1992 = vlaneseq
      %v1993 = vshrl.u32 %v1992, 7
      %v1994 = vsub.s32 0, %v1993
      %v1995 = vrot.slane %v1959, %v1994
      %v1996 = vlaneseq
      %v1997 = vshrl.u32 %v1996, 7
      %v1998 = vsub.s32 0, %v1997
      %v1999 = vrot.slane %v1960, %v1998
      %v2000 = vsel %vm1980, %v1987, 0.0
      %v2001 = vsel %vm1981, %v1991, 0.0
      %v2002 = vsel %vm1982, %v1995, 0.0
      %v2003 = vsel %vm1983, %v1999, 0.0
      %v2004 = vadd.f32 %v2000, %v2001
      %v2005 = vadd.f32 %v2004, %v2002
      %vm2006 = vcmask 982016
      %v2007 = vsel %vm2006, %v2003, 0.0
      %v2008 = vadd.f32 %v2005, %v2007
      %2009 = vadd.xlane.f32.xlu0 %v2008
      %v2010 = vpop.xlane.xlu0 %2009
      %vm2011 = vcmask 7168
      %2012 = vst.msk [vmem:[%s346] sm:$0xff] %vm2011, %v2010
      %p2013 = scmp.lt.s32.totalorder %s23, 1
      %s2014 = scalar_select %p2013, %s23, 1
      %s2015 = smul.addr %s2014, 8
      %s2016 = scalar_lea.vmem %s8, %s2015
      // Predicated region
      $region53: #{output_block_forward.1} parent=51 // pred_check
        %p2017 = pneg %p219
      $region54: #{output_block_forward.1} parent=51 // pred_check_branch
        %2019 = sbr.rel (%p2017) target = $region56
      $region55: #{output_block_forward.1} parent=51 // pred_region
        _
      $region56: #{output_block_forward.1} parent=51 // pred_fallthru
        _
    $region52: #{output_block_forward.1} parent=5 // pred_fallthru
      _
    %p2020 = scmp.le.s32.totalorder 2, %s18
    // Predicated region
    $region57: #{output_block_forward.1} parent=5 // pred_check
      %p2021 = pneg %p2020
    $region58: #{output_block_forward.1} parent=5 // pred_check_branch
      %2023 = sbr.rel (%p2021) target = $region60
    $region59: #{output_block_forward.1} parent=5 // pred_region
      %s2024 = ssub.s32 %s18, 2
      // Predicated region
      $region61: #{output_block_forward.1} parent=59 // pred_check
        %p2025 = pneg %p225
      $region62: #{output_block_forward.1} parent=59 // pred_check_branch
        %2027 = sbr.rel (%p2025) target = $region64
      $region63: #{output_block_forward.1} parent=59 // pred_region
        %p2028 = scmp.lt.s32.totalorder %s24, 1
        %s2029 = scalar_select %p2028, %s24, 1
        %s2030 = smul.addr %s2029, 8
        %s2031 = scalar_lea.vmem %s8, %s2030
      $region64: #{output_block_forward.1} parent=59 // pred_fallthru
        _
    $region60: #{output_block_forward.1} parent=5 // pred_fallthru
      _
  $region6: #{output_block_forward.1} parent=0 // loop_footer
    %s22 = sadd.s32 1, %s18
  $region7: #{output_block_forward.1} parent=0 // loop_footer_branch
    %17 = sbr.rel target = $region3
  $region8: #{output_block_forward.1} parent=0 // loop_exit
    _

</llo_original>
